<compile_context>
chip_gen: v7x
topology: tpu7x:2x2x1
jax: 0.10.0
libtpu: 0.0.40
codegen_flags: <defaults>
</compile_context>

<pallas_src>
import math

import jax
import jax.numpy as jnp
from jax.experimental import pallas as pl
from jax.experimental.pallas import tpu as pltpu


# ---------------------------------------------------------------------------
# Pallas kernel: one grid step == one chunk of Tc GRU timesteps.
#   xg_ref   : (Tc, B, 3H)  precomputed x@W_ih + b_ih (+ b_hh folded for r,z gates)
#   w_hh_ref : (H, 3H)      fused hidden->hidden weights (gate order r,z,n)
#   bhn_ref  : (1, H)       b_hh for the n gate (must stay inside r*(...))
#   h_out_ref: (Tc, B, H)   hidden states for this chunk
#   h_ref    : (B, H) VMEM  hidden-state carry across grid iterations
# ---------------------------------------------------------------------------
def gru_chunk_kernel(xg_ref, w_hh_ref, bhn_ref, h_out_ref, h_ref):
    @pl.when(pl.program_id(0) == 0)
    def _():
        h_ref[...] = jnp.zeros_like(h_ref)

    H = h_ref.shape[-1]
    Tc = xg_ref.shape[0]

    # Load the grid-invariant operands once per chunk (hoisted out of the step loop).
    w_hh = w_hh_ref[...]        # (H, 3H)
    b_hn = bhn_ref[...]         # (1, H)

    def step(i, h):
        xg = xg_ref[i]          # (B, 3H) input-gate pre-activations (biases folded)
        # Single fused MXU push for all three hidden gates.
        hg = jnp.dot(h, w_hh, preferred_element_type=jnp.float32)   # (B, 3H)

        # PyTorch GRU gate order: r (reset), z (update), n (new).
        r = jax.nn.sigmoid(xg[:, :H] + hg[:, :H])
        z = jax.nn.sigmoid(xg[:, H:2 * H] + hg[:, H:2 * H])
        n = jnp.tanh(xg[:, 2 * H:] + r * (hg[:, 2 * H:] + b_hn))
        h_new = (1.0 - z) * n + z * h

        h_out_ref[i] = h_new.astype(h_out_ref.dtype)
        return h_new

    # Unrolled fixed-trip inner loop over the chunk (LLO scheduler visibility).
    h_ref[...] = jax.lax.fori_loop(0, Tc, step, h_ref[...], unroll=True)


# ---------------------------------------------------------------------------
# Wrapper: embedding gather (glue) + hoisted input projection + pallas_call
# over time chunks + hoisted fc projection.
# ---------------------------------------------------------------------------
def gru_model_forward(token_ids, params, *, time_chunk=8):
    emb_table = params["embedding"]          # (V, E), row 0 == 0 (padding_idx=0)
    w_ih = params["w_ih"]                    # (E, 3H)  gate order r,z,n
    w_hh = params["w_hh"]                    # (H, 3H)
    b_ih = params["b_ih"]                    # (3H,)
    b_hh = params["b_hh"]                    # (3H,)
    fc_w = params["fc_w"]                    # (H, NT)
    fc_b = params["fc_b"]                    # (NT,)

    B, T = token_ids.shape
    E = emb_table.shape[1]
    H = w_hh.shape[0]
    NT = fc_w.shape[1]

    # Embedding lookup (data-dependent gather) directly time-major — glue, plain JAX.
    x_tbe = emb_table[token_ids.T]           # (T, B, E)

    # Hoisted input projection: one big matmul for every timestep. b_ih is folded for
    # all gates; b_hh is additionally folded for r and z (the n gate's b_hh sits inside
    # the r*(...) term and is added in-kernel).
    bias_fold = jnp.concatenate([b_ih[:2 * H] + b_hh[:2 * H], b_ih[2 * H:]])
    xg = (x_tbe.reshape(T * B, E) @ w_ih + bias_fold).reshape(T, B, 3 * H)

    # Pad the time axis to a multiple of the chunk (trailing steps are sliced off).
    Tc = min(time_chunk, T)
    n_chunks = pl.cdiv(T, Tc)
    Tpad = n_chunks * Tc
    if Tpad != T:
        xg = jnp.pad(xg, ((0, Tpad - T), (0, 0), (0, 0)))

    b_hn = b_hh[2 * H:].reshape(1, H)

    grid_spec = pltpu.PrefetchScalarGridSpec(
        num_scalar_prefetch=0,
        grid=(n_chunks,),
        in_specs=[
            pl.BlockSpec((Tc, B, 3 * H), lambda c: (c, 0, 0)),   # precomputed input gates
            pl.BlockSpec((H, 3 * H), lambda c: (0, 0)),          # fused W_hh (grid-invariant)
            pl.BlockSpec((1, H), lambda c: (0, 0)),              # b_hh (n gate only)
        ],
        out_specs=pl.BlockSpec((Tc, B, H), lambda c: (c, 0, 0)),
        scratch_shapes=[pltpu.VMEM((B, H), jnp.float32)],        # hidden-state carry
    )

    hs = pl.pallas_call(
        gru_chunk_kernel,
        out_shape=jax.ShapeDtypeStruct((Tpad, B, H), jnp.float32),
        grid_spec=grid_spec,
        compiler_params=pltpu.CompilerParams(
            # Time-chunk axis carries state -> must stay serial. (A leading "parallel"
            # batch axis would be added for v7x's 2 TCs at realistic batch sizes.)
            dimension_semantics=("arbitrary",),
            vmem_limit_bytes=64 * 1024 * 1024,
        ),
    )(xg, w_hh, b_hn)

    hs = hs[:T]                                          # (T, B, H), drop padded steps
    # Hoisted fc: one dense matmul; einsum emits the batch_first layout directly.
    return jnp.einsum("tbh,hn->btn", hs, fc_w) + fc_b    # (B, T, NT)


# ---------------------------------------------------------------------------
# Pure-JAX reference (for correctness checking of the kernel).
# ---------------------------------------------------------------------------
def gru_model_reference(token_ids, params):
    emb = params["embedding"][token_ids]                 # (B, T, E)
    w_ih, w_hh = params["w_ih"], params["w_hh"]
    b_ih, b_hh = params["b_ih"], params["b_hh"]
    B, T, _ = emb.shape
    H = w_hh.shape[0]

    def gate(w, b, v, g):
        return v @ w[:, g * H:(g + 1) * H] + b[g * H:(g + 1) * H]

    def step(h, x_t):
        r = jax.nn.sigmoid(gate(w_ih, b_ih, x_t, 0) + gate(w_hh, b_hh, h, 0))
        z = jax.nn.sigmoid(gate(w_ih, b_ih, x_t, 1) + gate(w_hh, b_hh, h, 1))
        n = jnp.tanh(gate(w_ih, b_ih, x_t, 2) + r * gate(w_hh, b_hh, h, 2))
        h_new = (1.0 - z) * n + z * h
        return h_new, h_new

    h0 = jnp.zeros((B, H), jnp.float32)
    _, hs = jax.lax.scan(step, h0, jnp.transpose(emb, (1, 0, 2)))   # (T, B, H)
    return jnp.transpose(hs, (1, 0, 2)) @ params["fc_w"] + params["fc_b"]


# ---------------------------------------------------------------------------
# Deterministic parameter init (shapes follow GRUModel.__init__; scaled down).
# Gate order everywhere is r, z, n (matching PyTorch's GRU weight layout).
# ---------------------------------------------------------------------------
def init_params(key, vocab_size, n_tags, embedding_dim, hidden_dim):
    ks = jax.random.split(key, 8)
    k_gru = 1.0 / math.sqrt(hidden_dim)
    k_fc = 1.0 / math.sqrt(hidden_dim)

    embedding = jax.random.normal(ks[0], (vocab_size, embedding_dim), jnp.float32)
    embedding = embedding.at[0].set(0.0)   # padding_idx=0

    def u(k, shape, lim):
        return jax.random.uniform(k, shape, jnp.float32, minval=-lim, maxval=lim)

    params = {
        "embedding": embedding,
        # PyTorch stores weight_ih as (3H, E); pre-transposed + gate-concatenated -> (E, 3H)
        "w_ih": u(ks[1], (embedding_dim, 3 * hidden_dim), k_gru),
        "w_hh": u(ks[2], (hidden_dim, 3 * hidden_dim), k_gru),
        "b_ih": u(ks[3], (3 * hidden_dim,), k_gru),
        "b_hh": u(ks[4], (3 * hidden_dim,), k_gru),
        # PyTorch Linear weight is (n_tags, H); pre-transposed -> (H, n_tags)
        "fc_w": u(ks[5], (hidden_dim, n_tags), k_fc),
        "fc_b": u(ks[6], (n_tags,), k_fc),
    }
    return params


if __name__ == "__main__":
    # Small shapes consistent with the module's forward:
    #   token ids (B, T) -> embeddings (B, T, E) -> GRU hidden (B, T, H) -> logits (B, T, NT)
    B, T = 2, 16
    VOCAB, N_TAGS = 64, 16
    EMB_DIM, HIDDEN_DIM = 32, 64

    key = jax.random.PRNGKey(0)
    pkey, dkey = jax.random.split(key)
    params = init_params(pkey, VOCAB, N_TAGS, EMB_DIM, HIDDEN_DIM)

    token_ids = jax.random.randint(dkey, (B, T), 0, VOCAB, dtype=jnp.int32)
    # Force a couple of padding tokens (id 0) like padded NER batches.
    token_ids = token_ids.at[0, -1].set(0).at[1, -2:].set(0)

    out = gru_model_forward(token_ids, params, time_chunk=8)   # grid of 2 chunks
    out = jax.block_until_ready(out)

    ref = gru_model_reference(token_ids, params)
    assert out.shape == (B, T, N_TAGS)
    assert jnp.allclose(out, ref, atol=1e-4, rtol=1e-4), "kernel/reference mismatch"

    print("KERNEL_OK")
</pallas_src>

<mosaic_0001>
module attributes {stable_mosaic.version = 11 : i64} {
  func.func @gru_chunk_kernel(%arg0: i32, %arg1: memref<8x2x192xf32, #tpu.memory_space<vmem>>, %arg2: memref<64x192xf32, #tpu.memory_space<vmem>>, %arg3: memref<1x64xf32, #tpu.memory_space<vmem>>, %arg4: memref<8x2x64xf32, #tpu.memory_space<vmem>>, %arg5: memref<2x64xf32, #tpu.memory_space<vmem>>) attributes {dimension_semantics = [#tpu.dimension_semantics<arbitrary>], iteration_bounds = array<i64: 2>, scalar_prefetch = 0 : i64, scratch_operands = 1 : i64, tpu.core_type = #tpu.core_type<tc>, window_params = [{transform_indices = @transform_0, window_bounds = array<i64: 8, 2, 192>}, {pipeline_mode = #tpu.pipeline_mode<synchronous>, transform_indices = @transform_1, window_bounds = array<i64: 64, 192>}, {pipeline_mode = #tpu.pipeline_mode<synchronous>, transform_indices = @transform_2, window_bounds = array<i64: 1, 64>}, {transform_indices = @transform_3, window_bounds = array<i64: 8, 2, 64>}]} {
    %c0_i32 = arith.constant 0 : i32
    %0 = arith.cmpi eq, %arg0, %c0_i32 : i32
    %1 = arith.extui %0 : i1 to i32
    %c0_i32_0 = arith.constant 0 : i32
    %2 = arith.cmpi ne, %1, %c0_i32_0 : i32
    scf.if %2 {
      %cst_72 = arith.constant 0.000000e+00 : f32
      %295 = vector.broadcast %cst_72 : f32 to vector<2x64xf32>
      %c0_73 = arith.constant 0 : index
      %c0_74 = arith.constant 0 : index
      %296 = vector.load %arg5[%c0_73, %c0_74] : memref<2x64xf32, #tpu.memory_space<vmem>>, vector<2x64xf32>
      tpu.vector_store %arg5[%c0_73, %c0_74], %295 {strides = array<i32>} : memref<2x64xf32, #tpu.memory_space<vmem>>, vector<2x64xf32>,
    } else {
    }
    %c0 = arith.constant 0 : index
    %c0_1 = arith.constant 0 : index
    %3 = vector.load %arg2[%c0, %c0_1] : memref<64x192xf32, #tpu.memory_space<vmem>>, vector<64x192xf32>
    %c0_2 = arith.constant 0 : index
    %c0_3 = arith.constant 0 : index
    %4 = vector.load %arg3[%c0_2, %c0_3] : memref<1x64xf32, #tpu.memory_space<vmem>>, vector<1x64xf32>
    %c0_4 = arith.constant 0 : index
    %c0_5 = arith.constant 0 : index
    %5 = vector.load %arg5[%c0_4, %c0_5] : memref<2x64xf32, #tpu.memory_space<vmem>>, vector<2x64xf32>
    %c0_i32_6 = arith.constant 0 : i32
    %6 = arith.index_cast %c0_i32_6 : i32 to index
    %c0_7 = arith.constant 0 : index
    %c0_8 = arith.constant 0 : index
    %7 = vector.load %arg1[%6, %c0_7, %c0_8] : memref<8x2x192xf32, #tpu.memory_space<vmem>>, vector<1x2x192xf32>
    %8 = vector.shape_cast %7 : vector<1x2x192xf32> to vector<2x192xf32>
    %cst = arith.constant dense<0.000000e+00> : vector<2x192xf32>
    %9 = tpu.matmul %5, %3, %cst {dimension_numbers = #tpu.dot_dimension_numbers<[1], [0], [0], [1], [0, 0, 1, 1], [], []>} : vector<2x64xf32>, vector<64x192xf32>, vector<2x192xf32> -> vector<2x192xf32>
    %10 = vector.extract_strided_slice %8 {offsets = [0, 0], sizes = [2, 64], strides = [1, 1]} : vector<2x192xf32> to vector<2x64xf32>
    %11 = vector.extract_strided_slice %9 {offsets = [0, 0], sizes = [2, 64], strides = [1, 1]} : vector<2x192xf32> to vector<2x64xf32>
    %12 = arith.addf %10, %11 : vector<2x64xf32>
    %13 = arith.negf %12 : vector<2x64xf32>
    %14 = math.exp %13 : vector<2x64xf32>
    %cst_9 = arith.constant 1.000000e+00 : f32
    %15 = vector.broadcast %cst_9 : f32 to vector<2x64xf32>
    %16 = arith.addf %15, %14 : vector<2x64xf32>
    %17 = arith.divf %15, %16 : vector<2x64xf32>
    %18 = vector.extract_strided_slice %8 {offsets = [0, 64], sizes = [2, 64], strides = [1, 1]} : vector<2x192xf32> to vector<2x64xf32>
    %19 = vector.extract_strided_slice %9 {offsets = [0, 64], sizes = [2, 64], strides = [1, 1]} : vector<2x192xf32> to vector<2x64xf32>
    %20 = arith.addf %18, %19 : vector<2x64xf32>
    %21 = arith.negf %20 : vector<2x64xf32>
    %22 = math.exp %21 : vector<2x64xf32>
    %cst_10 = arith.constant 1.000000e+00 : f32
    %23 = vector.broadcast %cst_10 : f32 to vector<2x64xf32>
    %24 = arith.addf %23, %22 : vector<2x64xf32>
    %25 = arith.divf %23, %24 : vector<2x64xf32>
    %26 = vector.extract_strided_slice %8 {offsets = [0, 128], sizes = [2, 64], strides = [1, 1]} : vector<2x192xf32> to vector<2x64xf32>
    %27 = vector.extract_strided_slice %9 {offsets = [0, 128], sizes = [2, 64], strides = [1, 1]} : vector<2x192xf32> to vector<2x64xf32>
    %28 = vector.broadcast %4 : vector<1x64xf32> to vector<2x64xf32>
    %29 = arith.addf %27, %28 : vector<2x64xf32>
    %30 = arith.mulf %17, %29 : vector<2x64xf32>
    %31 = arith.addf %26, %30 : vector<2x64xf32>
    %32 = math.tanh %31 : vector<2x64xf32>
    %cst_11 = arith.constant 1.000000e+00 : f32
    %33 = vector.broadcast %cst_11 : f32 to vector<2x64xf32>
    %34 = arith.subf %33, %25 : vector<2x64xf32>
    %35 = arith.mulf %34, %32 : vector<2x64xf32>
    %36 = arith.mulf %25, %5 : vector<2x64xf32>
    %37 = arith.addf %35, %36 : vector<2x64xf32>
    %38 = arith.index_cast %c0_i32_6 : i32 to index
    %c0_12 = arith.constant 0 : index
    %c0_13 = arith.constant 0 : index
    %39 = vector.load %arg4[%38, %c0_12, %c0_13] : memref<8x2x64xf32, #tpu.memory_space<vmem>>, vector<1x2x64xf32>
    %40 = vector.shape_cast %39 : vector<1x2x64xf32> to vector<2x64xf32>
    %41 = vector.shape_cast %37 : vector<2x64xf32> to vector<1x2x64xf32>
    tpu.vector_store %arg4[%38, %c0_12, %c0_13], %41 {strides = array<i32>} : memref<8x2x64xf32, #tpu.memory_space<vmem>>, vector<1x2x64xf32>,
    %c1_i32 = arith.constant 1 : i32
    %42 = arith.index_cast %c1_i32 : i32 to index
    %c0_14 = arith.constant 0 : index
    %c0_15 = arith.constant 0 : index
    %43 = vector.load %arg1[%42, %c0_14, %c0_15] : memref<8x2x192xf32, #tpu.memory_space<vmem>>, vector<1x2x192xf32>
    %44 = vector.shape_cast %43 : vector<1x2x192xf32> to vector<2x192xf32>
    %cst_16 = arith.constant dense<0.000000e+00> : vector<2x192xf32>
    %45 = tpu.matmul %37, %3, %cst_16 {dimension_numbers = #tpu.dot_dimension_numbers<[1], [0], [0], [1], [0, 0, 1, 1], [], []>} : vector<2x64xf32>, vector<64x192xf32>, vector<2x192xf32> -> vector<2x192xf32>
    %46 = vector.extract_strided_slice %44 {offsets = [0, 0], sizes = [2, 64], strides = [1, 1]} : vector<2x192xf32> to vector<2x64xf32>
    %47 = vector.extract_strided_slice %45 {offsets = [0, 0], sizes = [2, 64], strides = [1, 1]} : vector<2x192xf32> to vector<2x64xf32>
    %48 = arith.addf %46, %47 : vector<2x64xf32>
    %49 = arith.negf %48 : vector<2x64xf32>
    %50 = math.exp %49 : vector<2x64xf32>
    %cst_17 = arith.constant 1.000000e+00 : f32
    %51 = vector.broadcast %cst_17 : f32 to vector<2x64xf32>
    %52 = arith.addf %51, %50 : vector<2x64xf32>
    %53 = arith.divf %51, %52 : vector<2x64xf32>
    %54 = vector.extract_strided_slice %44 {offsets = [0, 64], sizes = [2, 64], strides = [1, 1]} : vector<2x192xf32> to vector<2x64xf32>
    %55 = vector.extract_strided_slice %45 {offsets = [0, 64], sizes = [2, 64], strides = [1, 1]} : vector<2x192xf32> to vector<2x64xf32>
    %56 = arith.addf %54, %55 : vector<2x64xf32>
    %57 = arith.negf %56 : vector<2x64xf32>
    %58 = math.exp %57 : vector<2x64xf32>
    %cst_18 = arith.constant 1.000000e+00 : f32
    %59 = vector.broadcast %cst_18 : f32 to vector<2x64xf32>
    %60 = arith.addf %59, %58 : vector<2x64xf32>
    %61 = arith.divf %59, %60 : vector<2x64xf32>
    %62 = vector.extract_strided_slice %44 {offsets = [0, 128], sizes = [2, 64], strides = [1, 1]} : vector<2x192xf32> to vector<2x64xf32>
    %63 = vector.extract_strided_slice %45 {offsets = [0, 128], sizes = [2, 64], strides = [1, 1]} : vector<2x192xf32> to vector<2x64xf32>
    %64 = vector.broadcast %4 : vector<1x64xf32> to vector<2x64xf32>
    %65 = arith.addf %63, %64 : vector<2x64xf32>
    %66 = arith.mulf %53, %65 : vector<2x64xf32>
    %67 = arith.addf %62, %66 : vector<2x64xf32>
    %68 = math.tanh %67 : vector<2x64xf32>
    %cst_19 = arith.constant 1.000000e+00 : f32
    %69 = vector.broadcast %cst_19 : f32 to vector<2x64xf32>
    %70 = arith.subf %69, %61 : vector<2x64xf32>
    %71 = arith.mulf %70, %68 : vector<2x64xf32>
    %72 = arith.mulf %61, %37 : vector<2x64xf32>
    %73 = arith.addf %71, %72 : vector<2x64xf32>
    %74 = arith.index_cast %c1_i32 : i32 to index
    %c0_20 = arith.constant 0 : index
    %c0_21 = arith.constant 0 : index
    %75 = vector.load %arg4[%74, %c0_20, %c0_21] : memref<8x2x64xf32, #tpu.memory_space<vmem>>, vector<1x2x64xf32>
    %76 = vector.shape_cast %75 : vector<1x2x64xf32> to vector<2x64xf32>
    %77 = vector.shape_cast %73 : vector<2x64xf32> to vector<1x2x64xf32>
    tpu.vector_store %arg4[%74, %c0_20, %c0_21], %77 {strides = array<i32>} : memref<8x2x64xf32, #tpu.memory_space<vmem>>, vector<1x2x64xf32>,
    %c2_i32 = arith.constant 2 : i32
    %78 = arith.index_cast %c2_i32 : i32 to index
    %c0_22 = arith.constant 0 : index
    %c0_23 = arith.constant 0 : index
    %79 = vector.load %arg1[%78, %c0_22, %c0_23] : memref<8x2x192xf32, #tpu.memory_space<vmem>>, vector<1x2x192xf32>
    %80 = vector.shape_cast %79 : vector<1x2x192xf32> to vector<2x192xf32>
    %cst_24 = arith.constant dense<0.000000e+00> : vector<2x192xf32>
    %81 = tpu.matmul %73, %3, %cst_24 {dimension_numbers = #tpu.dot_dimension_numbers<[1], [0], [0], [1], [0, 0, 1, 1], [], []>} : vector<2x64xf32>, vector<64x192xf32>, vector<2x192xf32> -> vector<2x192xf32>
    %82 = vector.extract_strided_slice %80 {offsets = [0, 0], sizes = [2, 64], strides = [1, 1]} : vector<2x192xf32> to vector<2x64xf32>
    %83 = vector.extract_strided_slice %81 {offsets = [0, 0], sizes = [2, 64], strides = [1, 1]} : vector<2x192xf32> to vector<2x64xf32>
    %84 = arith.addf %82, %83 : vector<2x64xf32>
    %85 = arith.negf %84 : vector<2x64xf32>
    %86 = math.exp %85 : vector<2x64xf32>
    %cst_25 = arith.constant 1.000000e+00 : f32
    %87 = vector.broadcast %cst_25 : f32 to vector<2x64xf32>
    %88 = arith.addf %87, %86 : vector<2x64xf32>
    %89 = arith.divf %87, %88 : vector<2x64xf32>
    %90 = vector.extract_strided_slice %80 {offsets = [0, 64], sizes = [2, 64], strides = [1, 1]} : vector<2x192xf32> to vector<2x64xf32>
    %91 = vector.extract_strided_slice %81 {offsets = [0, 64], sizes = [2, 64], strides = [1, 1]} : vector<2x192xf32> to vector<2x64xf32>
    %92 = arith.addf %90, %91 : vector<2x64xf32>
    %93 = arith.negf %92 : vector<2x64xf32>
    %94 = math.exp %93 : vector<2x64xf32>
    %cst_26 = arith.constant 1.000000e+00 : f32
    %95 = vector.broadcast %cst_26 : f32 to vector<2x64xf32>
    %96 = arith.addf %95, %94 : vector<2x64xf32>
    %97 = arith.divf %95, %96 : vector<2x64xf32>
    %98 = vector.extract_strided_slice %80 {offsets = [0, 128], sizes = [2, 64], strides = [1, 1]} : vector<2x192xf32> to vector<2x64xf32>
    %99 = vector.extract_strided_slice %81 {offsets = [0, 128], sizes = [2, 64], strides = [1, 1]} : vector<2x192xf32> to vector<2x64xf32>
    %100 = vector.broadcast %4 : vector<1x64xf32> to vector<2x64xf32>
    %101 = arith.addf %99, %100 : vector<2x64xf32>
    %102 = arith.mulf %89, %101 : vector<2x64xf32>
    %103 = arith.addf %98, %102 : vector<2x64xf32>
    %104 = math.tanh %103 : vector<2x64xf32>
    %cst_27 = arith.constant 1.000000e+00 : f32
    %105 = vector.broadcast %cst_27 : f32 to vector<2x64xf32>
    %106 = arith.subf %105, %97 : vector<2x64xf32>
    %107 = arith.mulf %106, %104 : vector<2x64xf32>
    %108 = arith.mulf %97, %73 : vector<2x64xf32>
    %109 = arith.addf %107, %108 : vector<2x64xf32>
    %110 = arith.index_cast %c2_i32 : i32 to index
    %c0_28 = arith.constant 0 : index
    %c0_29 = arith.constant 0 : index
    %111 = vector.load %arg4[%110, %c0_28, %c0_29] : memref<8x2x64xf32, #tpu.memory_space<vmem>>, vector<1x2x64xf32>
    %112 = vector.shape_cast %111 : vector<1x2x64xf32> to vector<2x64xf32>
    %113 = vector.shape_cast %109 : vector<2x64xf32> to vector<1x2x64xf32>
    tpu.vector_store %arg4[%110, %c0_28, %c0_29], %113 {strides = array<i32>} : memref<8x2x64xf32, #tpu.memory_space<vmem>>, vector<1x2x64xf32>,
    %c3_i32 = arith.constant 3 : i32
    %114 = arith.index_cast %c3_i32 : i32 to index
    %c0_30 = arith.constant 0 : index
    %c0_31 = arith.constant 0 : index
    %115 = vector.load %arg1[%114, %c0_30, %c0_31] : memref<8x2x192xf32, #tpu.memory_space<vmem>>, vector<1x2x192xf32>
    %116 = vector.shape_cast %115 : vector<1x2x192xf32> to vector<2x192xf32>
    %cst_32 = arith.constant dense<0.000000e+00> : vector<2x192xf32>
    %117 = tpu.matmul %109, %3, %cst_32 {dimension_numbers = #tpu.dot_dimension_numbers<[1], [0], [0], [1], [0, 0, 1, 1], [], []>} : vector<2x64xf32>, vector<64x192xf32>, vector<2x192xf32> -> vector<2x192xf32>
    %118 = vector.extract_strided_slice %116 {offsets = [0, 0], sizes = [2, 64], strides = [1, 1]} : vector<2x192xf32> to vector<2x64xf32>
    %119 = vector.extract_strided_slice %117 {offsets = [0, 0], sizes = [2, 64], strides = [1, 1]} : vector<2x192xf32> to vector<2x64xf32>
    %120 = arith.addf %118, %119 : vector<2x64xf32>
    %121 = arith.negf %120 : vector<2x64xf32>
    %122 = math.exp %121 : vector<2x64xf32>
    %cst_33 = arith.constant 1.000000e+00 : f32
    %123 = vector.broadcast %cst_33 : f32 to vector<2x64xf32>
    %124 = arith.addf %123, %122 : vector<2x64xf32>
    %125 = arith.divf %123, %124 : vector<2x64xf32>
    %126 = vector.extract_strided_slice %116 {offsets = [0, 64], sizes = [2, 64], strides = [1, 1]} : vector<2x192xf32> to vector<2x64xf32>
    %127 = vector.extract_strided_slice %117 {offsets = [0, 64], sizes = [2, 64], strides = [1, 1]} : vector<2x192xf32> to vector<2x64xf32>
    %128 = arith.addf %126, %127 : vector<2x64xf32>
    %129 = arith.negf %128 : vector<2x64xf32>
    %130 = math.exp %129 : vector<2x64xf32>
    %cst_34 = arith.constant 1.000000e+00 : f32
    %131 = vector.broadcast %cst_34 : f32 to vector<2x64xf32>
    %132 = arith.addf %131, %130 : vector<2x64xf32>
    %133 = arith.divf %131, %132 : vector<2x64xf32>
    %134 = vector.extract_strided_slice %116 {offsets = [0, 128], sizes = [2, 64], strides = [1, 1]} : vector<2x192xf32> to vector<2x64xf32>
    %135 = vector.extract_strided_slice %117 {offsets = [0, 128], sizes = [2, 64], strides = [1, 1]} : vector<2x192xf32> to vector<2x64xf32>
    %136 = vector.broadcast %4 : vector<1x64xf32> to vector<2x64xf32>
    %137 = arith.addf %135, %136 : vector<2x64xf32>
    %138 = arith.mulf %125, %137 : vector<2x64xf32>
    %139 = arith.addf %134, %138 : vector<2x64xf32>
    %140 = math.tanh %139 : vector<2x64xf32>
    %cst_35 = arith.constant 1.000000e+00 : f32
    %141 = vector.broadcast %cst_35 : f32 to vector<2x64xf32>
    %142 = arith.subf %141, %133 : vector<2x64xf32>
    %143 = arith.mulf %142, %140 : vector<2x64xf32>
    %144 = arith.mulf %133, %109 : vector<2x64xf32>
    %145 = arith.addf %143, %144 : vector<2x64xf32>
    %146 = arith.index_cast %c3_i32 : i32 to index
    %c0_36 = arith.constant 0 : index
    %c0_37 = arith.constant 0 : index
    %147 = vector.load %arg4[%146, %c0_36, %c0_37] : memref<8x2x64xf32, #tpu.memory_space<vmem>>, vector<1x2x64xf32>
    %148 = vector.shape_cast %147 : vector<1x2x64xf32> to vector<2x64xf32>
    %149 = vector.shape_cast %145 : vector<2x64xf32> to vector<1x2x64xf32>
    tpu.vector_store %arg4[%146, %c0_36, %c0_37], %149 {strides = array<i32>} : memref<8x2x64xf32, #tpu.memory_space<vmem>>, vector<1x2x64xf32>,
    %c4_i32 = arith.constant 4 : i32
    %150 = arith.index_cast %c4_i32 : i32 to index
    %c0_38 = arith.constant 0 : index
    %c0_39 = arith.constant 0 : index
    %151 = vector.load %arg1[%150, %c0_38, %c0_39] : memref<8x2x192xf32, #tpu.memory_space<vmem>>, vector<1x2x192xf32>
    %152 = vector.shape_cast %151 : vector<1x2x192xf32> to vector<2x192xf32>
    %cst_40 = arith.constant dense<0.000000e+00> : vector<2x192xf32>
    %153 = tpu.matmul %145, %3, %cst_40 {dimension_numbers = #tpu.dot_dimension_numbers<[1], [0], [0], [1], [0, 0, 1, 1], [], []>} : vector<2x64xf32>, vector<64x192xf32>, vector<2x192xf32> -> vector<2x192xf32>
    %154 = vector.extract_strided_slice %152 {offsets = [0, 0], sizes = [2, 64], strides = [1, 1]} : vector<2x192xf32> to vector<2x64xf32>
    %155 = vector.extract_strided_slice %153 {offsets = [0, 0], sizes = [2, 64], strides = [1, 1]} : vector<2x192xf32> to vector<2x64xf32>
    %156 = arith.addf %154, %155 : vector<2x64xf32>
    %157 = arith.negf %156 : vector<2x64xf32>
    %158 = math.exp %157 : vector<2x64xf32>
    %cst_41 = arith.constant 1.000000e+00 : f32
    %159 = vector.broadcast %cst_41 : f32 to vector<2x64xf32>
    %160 = arith.addf %159, %158 : vector<2x64xf32>
    %161 = arith.divf %159, %160 : vector<2x64xf32>
    %162 = vector.extract_strided_slice %152 {offsets = [0, 64], sizes = [2, 64], strides = [1, 1]} : vector<2x192xf32> to vector<2x64xf32>
    %163 = vector.extract_strided_slice %153 {offsets = [0, 64], sizes = [2, 64], strides = [1, 1]} : vector<2x192xf32> to vector<2x64xf32>
    %164 = arith.addf %162, %163 : vector<2x64xf32>
    %165 = arith.negf %164 : vector<2x64xf32>
    %166 = math.exp %165 : vector<2x64xf32>
    %cst_42 = arith.constant 1.000000e+00 : f32
    %167 = vector.broadcast %cst_42 : f32 to vector<2x64xf32>
    %168 = arith.addf %167, %166 : vector<2x64xf32>
    %169 = arith.divf %167, %168 : vector<2x64xf32>
    %170 = vector.extract_strided_slice %152 {offsets = [0, 128], sizes = [2, 64], strides = [1, 1]} : vector<2x192xf32> to vector<2x64xf32>
    %171 = vector.extract_strided_slice %153 {offsets = [0, 128], sizes = [2, 64], strides = [1, 1]} : vector<2x192xf32> to vector<2x64xf32>
    %172 = vector.broadcast %4 : vector<1x64xf32> to vector<2x64xf32>
    %173 = arith.addf %171, %172 : vector<2x64xf32>
    %174 = arith.mulf %161, %173 : vector<2x64xf32>
    %175 = arith.addf %170, %174 : vector<2x64xf32>
    %176 = math.tanh %175 : vector<2x64xf32>
    %cst_43 = arith.constant 1.000000e+00 : f32
    %177 = vector.broadcast %cst_43 : f32 to vector<2x64xf32>
    %178 = arith.subf %177, %169 : vector<2x64xf32>
    %179 = arith.mulf %178, %176 : vector<2x64xf32>
    %180 = arith.mulf %169, %145 : vector<2x64xf32>
    %181 = arith.addf %179, %180 : vector<2x64xf32>
    %182 = arith.index_cast %c4_i32 : i32 to index
    %c0_44 = arith.constant 0 : index
    %c0_45 = arith.constant 0 : index
    %183 = vector.load %arg4[%182, %c0_44, %c0_45] : memref<8x2x64xf32, #tpu.memory_space<vmem>>, vector<1x2x64xf32>
    %184 = vector.shape_cast %183 : vector<1x2x64xf32> to vector<2x64xf32>
    %185 = vector.shape_cast %181 : vector<2x64xf32> to vector<1x2x64xf32>
    tpu.vector_store %arg4[%182, %c0_44, %c0_45], %185 {strides = array<i32>} : memref<8x2x64xf32, #tpu.memory_space<vmem>>, vector<1x2x64xf32>,
    %c5_i32 = arith.constant 5 : i32
    %186 = arith.index_cast %c5_i32 : i32 to index
    %c0_46 = arith.constant 0 : index
    %c0_47 = arith.constant 0 : index
    %187 = vector.load %arg1[%186, %c0_46, %c0_47] : memref<8x2x192xf32, #tpu.memory_space<vmem>>, vector<1x2x192xf32>
    %188 = vector.shape_cast %187 : vector<1x2x192xf32> to vector<2x192xf32>
    %cst_48 = arith.constant dense<0.000000e+00> : vector<2x192xf32>
    %189 = tpu.matmul %181, %3, %cst_48 {dimension_numbers = #tpu.dot_dimension_numbers<[1], [0], [0], [1], [0, 0, 1, 1], [], []>} : vector<2x64xf32>, vector<64x192xf32>, vector<2x192xf32> -> vector<2x192xf32>
    %190 = vector.extract_strided_slice %188 {offsets = [0, 0], sizes = [2, 64], strides = [1, 1]} : vector<2x192xf32> to vector<2x64xf32>
    %191 = vector.extract_strided_slice %189 {offsets = [0, 0], sizes = [2, 64], strides = [1, 1]} : vector<2x192xf32> to vector<2x64xf32>
    %192 = arith.addf %190, %191 : vector<2x64xf32>
    %193 = arith.negf %192 : vector<2x64xf32>
    %194 = math.exp %193 : vector<2x64xf32>
    %cst_49 = arith.constant 1.000000e+00 : f32
    %195 = vector.broadcast %cst_49 : f32 to vector<2x64xf32>
    %196 = arith.addf %195, %194 : vector<2x64xf32>
    %197 = arith.divf %195, %196 : vector<2x64xf32>
    %198 = vector.extract_strided_slice %188 {offsets = [0, 64], sizes = [2, 64], strides = [1, 1]} : vector<2x192xf32> to vector<2x64xf32>
    %199 = vector.extract_strided_slice %189 {offsets = [0, 64], sizes = [2, 64], strides = [1, 1]} : vector<2x192xf32> to vector<2x64xf32>
    %200 = arith.addf %198, %199 : vector<2x64xf32>
    %201 = arith.negf %200 : vector<2x64xf32>
    %202 = math.exp %201 : vector<2x64xf32>
    %cst_50 = arith.constant 1.000000e+00 : f32
    %203 = vector.broadcast %cst_50 : f32 to vector<2x64xf32>
    %204 = arith.addf %203, %202 : vector<2x64xf32>
    %205 = arith.divf %203, %204 : vector<2x64xf32>
    %206 = vector.extract_strided_slice %188 {offsets = [0, 128], sizes = [2, 64], strides = [1, 1]} : vector<2x192xf32> to vector<2x64xf32>
    %207 = vector.extract_strided_slice %189 {offsets = [0, 128], sizes = [2, 64], strides = [1, 1]} : vector<2x192xf32> to vector<2x64xf32>
    %208 = vector.broadcast %4 : vector<1x64xf32> to vector<2x64xf32>
    %209 = arith.addf %207, %208 : vector<2x64xf32>
    %210 = arith.mulf %197, %209 : vector<2x64xf32>
    %211 = arith.addf %206, %210 : vector<2x64xf32>
    %212 = math.tanh %211 : vector<2x64xf32>
    %cst_51 = arith.constant 1.000000e+00 : f32
    %213 = vector.broadcast %cst_51 : f32 to vector<2x64xf32>
    %214 = arith.subf %213, %205 : vector<2x64xf32>
    %215 = arith.mulf %214, %212 : vector<2x64xf32>
    %216 = arith.mulf %205, %181 : vector<2x64xf32>
    %217 = arith.addf %215, %216 : vector<2x64xf32>
    %218 = arith.index_cast %c5_i32 : i32 to index
    %c0_52 = arith.constant 0 : index
    %c0_53 = arith.constant 0 : index
    %219 = vector.load %arg4[%218, %c0_52, %c0_53] : memref<8x2x64xf32, #tpu.memory_space<vmem>>, vector<1x2x64xf32>
    %220 = vector.shape_cast %219 : vector<1x2x64xf32> to vector<2x64xf32>
    %221 = vector.shape_cast %217 : vector<2x64xf32> to vector<1x2x64xf32>
    tpu.vector_store %arg4[%218, %c0_52, %c0_53], %221 {strides = array<i32>} : memref<8x2x64xf32, #tpu.memory_space<vmem>>, vector<1x2x64xf32>,
    %c6_i32 = arith.constant 6 : i32
    %222 = arith.index_cast %c6_i32 : i32 to index
    %c0_54 = arith.constant 0 : index
    %c0_55 = arith.constant 0 : index
    %223 = vector.load %arg1[%222, %c0_54, %c0_55] : memref<8x2x192xf32, #tpu.memory_space<vmem>>, vector<1x2x192xf32>
    %224 = vector.shape_cast %223 : vector<1x2x192xf32> to vector<2x192xf32>
    %cst_56 = arith.constant dense<0.000000e+00> : vector<2x192xf32>
    %225 = tpu.matmul %217, %3, %cst_56 {dimension_numbers = #tpu.dot_dimension_numbers<[1], [0], [0], [1], [0, 0, 1, 1], [], []>} : vector<2x64xf32>, vector<64x192xf32>, vector<2x192xf32> -> vector<2x192xf32>
    %226 = vector.extract_strided_slice %224 {offsets = [0, 0], sizes = [2, 64], strides = [1, 1]} : vector<2x192xf32> to vector<2x64xf32>
    %227 = vector.extract_strided_slice %225 {offsets = [0, 0], sizes = [2, 64], strides = [1, 1]} : vector<2x192xf32> to vector<2x64xf32>
    %228 = arith.addf %226, %227 : vector<2x64xf32>
    %229 = arith.negf %228 : vector<2x64xf32>
    %230 = math.exp %229 : vector<2x64xf32>
    %cst_57 = arith.constant 1.000000e+00 : f32
    %231 = vector.broadcast %cst_57 : f32 to vector<2x64xf32>
    %232 = arith.addf %231, %230 : vector<2x64xf32>
    %233 = arith.divf %231, %232 : vector<2x64xf32>
    %234 = vector.extract_strided_slice %224 {offsets = [0, 64], sizes = [2, 64], strides = [1, 1]} : vector<2x192xf32> to vector<2x64xf32>
    %235 = vector.extract_strided_slice %225 {offsets = [0, 64], sizes = [2, 64], strides = [1, 1]} : vector<2x192xf32> to vector<2x64xf32>
    %236 = arith.addf %234, %235 : vector<2x64xf32>
    %237 = arith.negf %236 : vector<2x64xf32>
    %238 = math.exp %237 : vector<2x64xf32>
    %cst_58 = arith.constant 1.000000e+00 : f32
    %239 = vector.broadcast %cst_58 : f32 to vector<2x64xf32>
    %240 = arith.addf %239, %238 : vector<2x64xf32>
    %241 = arith.divf %239, %240 : vector<2x64xf32>
    %242 = vector.extract_strided_slice %224 {offsets = [0, 128], sizes = [2, 64], strides = [1, 1]} : vector<2x192xf32> to vector<2x64xf32>
    %243 = vector.extract_strided_slice %225 {offsets = [0, 128], sizes = [2, 64], strides = [1, 1]} : vector<2x192xf32> to vector<2x64xf32>
    %244 = vector.broadcast %4 : vector<1x64xf32> to vector<2x64xf32>
    %245 = arith.addf %243, %244 : vector<2x64xf32>
    %246 = arith.mulf %233, %245 : vector<2x64xf32>
    %247 = arith.addf %242, %246 : vector<2x64xf32>
    %248 = math.tanh %247 : vector<2x64xf32>
    %cst_59 = arith.constant 1.000000e+00 : f32
    %249 = vector.broadcast %cst_59 : f32 to vector<2x64xf32>
    %250 = arith.subf %249, %241 : vector<2x64xf32>
    %251 = arith.mulf %250, %248 : vector<2x64xf32>
    %252 = arith.mulf %241, %217 : vector<2x64xf32>
    %253 = arith.addf %251, %252 : vector<2x64xf32>
    %254 = arith.index_cast %c6_i32 : i32 to index
    %c0_60 = arith.constant 0 : index
    %c0_61 = arith.constant 0 : index
    %255 = vector.load %arg4[%254, %c0_60, %c0_61] : memref<8x2x64xf32, #tpu.memory_space<vmem>>, vector<1x2x64xf32>
    %256 = vector.shape_cast %255 : vector<1x2x64xf32> to vector<2x64xf32>
    %257 = vector.shape_cast %253 : vector<2x64xf32> to vector<1x2x64xf32>
    tpu.vector_store %arg4[%254, %c0_60, %c0_61], %257 {strides = array<i32>} : memref<8x2x64xf32, #tpu.memory_space<vmem>>, vector<1x2x64xf32>,
    %c7_i32 = arith.constant 7 : i32
    %258 = arith.index_cast %c7_i32 : i32 to index
    %c0_62 = arith.constant 0 : index
    %c0_63 = arith.constant 0 : index
    %259 = vector.load %arg1[%258, %c0_62, %c0_63] : memref<8x2x192xf32, #tpu.memory_space<vmem>>, vector<1x2x192xf32>
    %260 = vector.shape_cast %259 : vector<1x2x192xf32> to vector<2x192xf32>
    %cst_64 = arith.constant dense<0.000000e+00> : vector<2x192xf32>
    %261 = tpu.matmul %253, %3, %cst_64 {dimension_numbers = #tpu.dot_dimension_numbers<[1], [0], [0], [1], [0, 0, 1, 1], [], []>} : vector<2x64xf32>, vector<64x192xf32>, vector<2x192xf32> -> vector<2x192xf32>
    %262 = vector.extract_strided_slice %260 {offsets = [0, 0], sizes = [2, 64], strides = [1, 1]} : vector<2x192xf32> to vector<2x64xf32>
    %263 = vector.extract_strided_slice %261 {offsets = [0, 0], sizes = [2, 64], strides = [1, 1]} : vector<2x192xf32> to vector<2x64xf32>
    %264 = arith.addf %262, %263 : vector<2x64xf32>
    %265 = arith.negf %264 : vector<2x64xf32>
    %266 = math.exp %265 : vector<2x64xf32>
    %cst_65 = arith.constant 1.000000e+00 : f32
    %267 = vector.broadcast %cst_65 : f32 to vector<2x64xf32>
    %268 = arith.addf %267, %266 : vector<2x64xf32>
    %269 = arith.divf %267, %268 : vector<2x64xf32>
    %270 = vector.extract_strided_slice %260 {offsets = [0, 64], sizes = [2, 64], strides = [1, 1]} : vector<2x192xf32> to vector<2x64xf32>
    %271 = vector.extract_strided_slice %261 {offsets = [0, 64], sizes = [2, 64], strides = [1, 1]} : vector<2x192xf32> to vector<2x64xf32>
    %272 = arith.addf %270, %271 : vector<2x64xf32>
    %273 = arith.negf %272 : vector<2x64xf32>
    %274 = math.exp %273 : vector<2x64xf32>
    %cst_66 = arith.constant 1.000000e+00 : f32
    %275 = vector.broadcast %cst_66 : f32 to vector<2x64xf32>
    %276 = arith.addf %275, %274 : vector<2x64xf32>
    %277 = arith.divf %275, %276 : vector<2x64xf32>
    %278 = vector.extract_strided_slice %260 {offsets = [0, 128], sizes = [2, 64], strides = [1, 1]} : vector<2x192xf32> to vector<2x64xf32>
    %279 = vector.extract_strided_slice %261 {offsets = [0, 128], sizes = [2, 64], strides = [1, 1]} : vector<2x192xf32> to vector<2x64xf32>
    %280 = vector.broadcast %4 : vector<1x64xf32> to vector<2x64xf32>
    %281 = arith.addf %279, %280 : vector<2x64xf32>
    %282 = arith.mulf %269, %281 : vector<2x64xf32>
    %283 = arith.addf %278, %282 : vector<2x64xf32>
    %284 = math.tanh %283 : vector<2x64xf32>
    %cst_67 = arith.constant 1.000000e+00 : f32
    %285 = vector.broadcast %cst_67 : f32 to vector<2x64xf32>
    %286 = arith.subf %285, %277 : vector<2x64xf32>
    %287 = arith.mulf %286, %284 : vector<2x64xf32>
    %288 = arith.mulf %277, %253 : vector<2x64xf32>
    %289 = arith.addf %287, %288 : vector<2x64xf32>
    %290 = arith.index_cast %c7_i32 : i32 to index
    %c0_68 = arith.constant 0 : index
    %c0_69 = arith.constant 0 : index
    %291 = vector.load %arg4[%290, %c0_68, %c0_69] : memref<8x2x64xf32, #tpu.memory_space<vmem>>, vector<1x2x64xf32>
    %292 = vector.shape_cast %291 : vector<1x2x64xf32> to vector<2x64xf32>
    %293 = vector.shape_cast %289 : vector<2x64xf32> to vector<1x2x64xf32>
    tpu.vector_store %arg4[%290, %c0_68, %c0_69], %293 {strides = array<i32>} : memref<8x2x64xf32, #tpu.memory_space<vmem>>, vector<1x2x64xf32>,
    %c8_i32 = arith.constant 8 : i32
    %c0_70 = arith.constant 0 : index
    %c0_71 = arith.constant 0 : index
    %294 = vector.load %arg5[%c0_70, %c0_71] : memref<2x64xf32, #tpu.memory_space<vmem>>, vector<2x64xf32>
    tpu.vector_store %arg5[%c0_70, %c0_71], %289 {strides = array<i32>} : memref<2x64xf32, #tpu.memory_space<vmem>>, vector<2x64xf32>,
    return
  }
  func.func @transform_0(%arg0: i32) -> (i32, i32, i32) {
    %c0_i32 = arith.constant 0 : i32
    %c0_i32_0 = arith.constant 0 : i32
    %c0_i32_1 = arith.constant 0 : i32
    return %arg0, %c0_i32, %c0_i32_0 : i32, i32, i32
  }
  func.func @transform_1(%arg0: i32) -> (i32, i32) {
    %c0_i32 = arith.constant 0 : i32
    %c0_i32_0 = arith.constant 0 : i32
    %c0_i32_1 = arith.constant 0 : i32
    return %c0_i32, %c0_i32_0 : i32, i32
  }
  func.func @transform_2(%arg0: i32) -> (i32, i32) {
    %c0_i32 = arith.constant 0 : i32
    %c0_i32_0 = arith.constant 0 : i32
    %c0_i32_1 = arith.constant 0 : i32
    return %c0_i32, %c0_i32_0 : i32, i32
  }
  func.func @transform_3(%arg0: i32) -> (i32, i32, i32) {
    %c0_i32 = arith.constant 0 : i32
    %c0_i32_0 = arith.constant 0 : i32
    %c0_i32_1 = arith.constant 0 : i32
    return %arg0, %c0_i32, %c0_i32_0 : i32, i32, i32
  }
}

</mosaic_0001>

<llo_original>
// kernel: tpu_custom_call.1
$region0: #{tpu_custom_call.1}
  #allocation0 [shape = 'u32[]', space=smem, size = 0x4, offset = 0x4, fixed_abs, tag = 'smem constant byte address 0x4 - core index']
  #allocation1 [shape = 'u32[144,128]{1,0:T(1,128)}', space=vmem, size = 0x12000, scoped, tag = 'internal scratch']
  #allocation2 [shape = 'f32[2,64]{1,0:T(2,128)}', space=vmem, size = 0x400, scoped, tag = 'scratch operand']
  %s0 = inlined_call_operand.hbm [shape: f32[16,2,192], index: 0, kind: input, shape index: {}]
  %s1 = inlined_call_operand.hbm [shape: f32[64,192], index: 1, kind: input, shape index: {}]
  %s2 = inlined_call_operand.hbm [shape: f32[1,64], index: 2, kind: input, shape index: {}]
  %s3 = inlined_call_operand.hbm [shape: f32[16,2,64], index: 3, kind: output, shape index: {}]
  %s4 = sld [smem:[#allocation0]]
  $region61: #{tpu_custom_call.1} parent=0
    _
  %s6 = ssub.s32 1, %s4
  %s7 = scalar_select 0, %s6, %s4
  $region1: #{tpu_custom_call.1} parent=0
    #allocation3 [shape = 'u8[32768]{0}', space=vmem, size = 0x8000, scoped, tag = 'input window, operand 0']
    #allocation4 [shape = 's32[2]{0}', space=sflag, size = 0x8, scoped, tag = 'scoped memory for tpu_custom_call.1']
    #allocation5 [shape = 's32[2]{0}', space=sflag, size = 0x8, scoped, tag = 'scoped memory for tpu_custom_call.1']
    #allocation6 [shape = 'u8[65536]{0}', space=vmem, size = 0x10000, scoped, tag = 'input window, operand 1, single buffered']
    #allocation7 [shape = 's32[1]{0}', space=sflag, size = 0x4, scoped, tag = 'scoped memory for tpu_custom_call.1']
    #allocation8 [shape = 'u8[512]{0}', space=vmem, size = 0x400, scoped, tag = 'input window, operand 2, single buffered']
    #allocation9 [shape = 'u8[16384]{0}', space=vmem, size = 0x4000, scoped, tag = 'output window, operand 0']
    %8 = vsyncpa [#allocation4], 0
    %s9 = scalar_lea.sflag [#allocation4], 1
    %10 = vsyncpa %s9, 0
    %11 = vsyncpa [#allocation7], 0
    %12 = vsyncpa [#allocation5], 0
    %s13 = scalar_lea.sflag [#allocation5], 1
    %14 = vsyncpa %s13, 0
    loop: start=0, step=1, limit=4
    $region2: #{tpu_custom_call.1} parent=1 // loop_pre_header
      _
    $region3: #{tpu_custom_call.1} parent=1 // loop_header
      %s16 = sphi 0, %s20
      %p17 = scmp.ge.s32.totalorder %s16, 4
      %s26 = sphi 0, %s28
      %s29 = sphi 0, %s26
      %s30 = sphi 0, %s29
      %s46 = sphi 0, %s30
      %s50 = sphi 0, %s50
      %s52 = sphi 0, %s50
      %s53 = sphi 0, %s52
      %s67 = sphi 0, %s53
      %s71 = sphi 0, %s71
      %s73 = sphi 0, %s71
      %s74 = sphi 0, %s73
      %s88 = sphi 0, %s74
      %s94 = sphi 0, %s96
      %s97 = sphi 0, %s94
      %s98 = sphi 0, %s97
      %s114 = sphi 0, %s98
    $region4: #{tpu_custom_call.1} parent=1 // loop_header_branch
      %19 = sbr.rel (%p17) target = $region8
    $region5: #{tpu_custom_call.1} parent=1 // loop_body
      %s21 = ssub.s32 %s16, 1
      %s22 = ssub.s32 %s16, 2
      %s23 = sadd.s32 %s16, 1
      %s24 = ssub.s32 %s16, %s23
      %p25 = scmp.eq.s32.totalorder %s24, 0
      %s27 = sadd.s32 %s26, 1
      %s28 = scalar_select %p25, %s26, %s27
      %p31 = pneg %p25
      %p32 = scmp.eq.s32.totalorder %s16, 1
      %p33 = por %p31, %p32
      %p34 = scmp.ne.s32.totalorder %s26, %s29
      %p35 = scmp.eq.s32.totalorder %s16, 0
      %p36 = por %p34, %p35
      %p37 = scmp.ne.s32.totalorder %s26, %s29
      %p38 = scmp.eq.s32.totalorder %s21, 1
      %p39 = por %p37, %p38
      %p40 = scmp.ne.s32.totalorder %s29, %s30
      %p41 = scmp.eq.s32.totalorder %s21, 0
      %p42 = por %p40, %p41
      %p43 = scmp.ne.s32.totalorder %s29, %s30
      %p44 = scmp.eq.s32.totalorder %s22, 1
      %p45 = por %p43, %p44
      %p47 = scmp.ne.s32.totalorder %s30, %s46
      %p48 = scmp.eq.s32.totalorder %s22, 0
      %p49 = por %p47, %p48
      %s51 = sadd.s32 %s50, 1
      %p54 = scmp.eq.s32.totalorder %s16, 1
      %p55 = scmp.ne.s32.totalorder %s50, %s52
      %p56 = scmp.eq.s32.totalorder %s16, 0
      %p57 = por %p55, %p56
      %p58 = scmp.ne.s32.totalorder %s50, %s52
      %p59 = scmp.eq.s32.totalorder %s21, 1
      %p60 = por %p58, %p59
      %p61 = scmp.ne.s32.totalorder %s52, %s53
      %p62 = scmp.eq.s32.totalorder %s21, 0
      %p63 = por %p61, %p62
      %p64 = scmp.ne.s32.totalorder %s52, %s53
      %p65 = scmp.eq.s32.totalorder %s22, 1
      %p66 = por %p64, %p65
      %p68 = scmp.ne.s32.totalorder %s53, %s67
      %p69 = scmp.eq.s32.totalorder %s22, 0
      %p70 = por %p68, %p69
      %s72 = sadd.s32 %s71, 1
      %p75 = scmp.eq.s32.totalorder %s16, 1
      %p76 = scmp.ne.s32.totalorder %s71, %s73
      %p77 = scmp.eq.s32.totalorder %s16, 0
      %p78 = por %p76, %p77
      %p79 = scmp.ne.s32.totalorder %s71, %s73
      %p80 = scmp.eq.s32.totalorder %s21, 1
      %p81 = por %p79, %p80
      %p82 = scmp.ne.s32.totalorder %s73, %s74
      %p83 = scmp.eq.s32.totalorder %s21, 0
      %p84 = por %p82, %p83
      %p85 = scmp.ne.s32.totalorder %s73, %s74
      %p86 = scmp.eq.s32.totalorder %s22, 1
      %p87 = por %p85, %p86
      %p89 = scmp.ne.s32.totalorder %s74, %s88
      %p90 = scmp.eq.s32.totalorder %s22, 0
      %p91 = por %p89, %p90
      %s92 = ssub.s32 %s16, %s23
      %p93 = scmp.eq.s32.totalorder %s92, 0
      %s95 = sadd.s32 %s94, 1
      %s96 = scalar_select %p93, %s94, %s95
      %p99 = pneg %p93
      %p100 = scmp.eq.s32.totalorder %s16, 1
      %p101 = por %p99, %p100
      %p102 = scmp.ne.s32.totalorder %s94, %s97
      %p103 = scmp.eq.s32.totalorder %s16, 0
      %p104 = por %p102, %p103
      %p105 = scmp.ne.s32.totalorder %s94, %s97
      %p106 = scmp.eq.s32.totalorder %s21, 1
      %p107 = por %p105, %p106
      %p108 = scmp.ne.s32.totalorder %s97, %s98
      %p109 = scmp.eq.s32.totalorder %s21, 0
      %p110 = por %p108, %p109
      %p111 = scmp.ne.s32.totalorder %s97, %s98
      %p112 = scmp.eq.s32.totalorder %s22, 1
      %p113 = por %p111, %p112
      %p115 = scmp.ne.s32.totalorder %s98, %s114
      %p116 = scmp.eq.s32.totalorder %s22, 0
      %p117 = por %p115, %p116
      %p118 = scmp.le.s32.totalorder 1, %s16
      %p119 = scmp.lt.s32.totalorder %s16, 3
      %p120 = pnand %p118, %p119
      %p121 = pneg %p120
      // Predicated region
      $region9: #{tpu_custom_call.1} parent=5 // pred_check
        _
      $region10: #{tpu_custom_call.1} parent=5 // pred_check_branch
        %123 = sbr.rel (%p120) target = $region12
      $region11: #{tpu_custom_call.1} parent=5 // pred_region
        %s124 = ssub.s32 %s16, 1
        // Predicated region
        $region13: #{tpu_custom_call.1} parent=11 // pred_check
          %p125 = pneg %p63
        $region14: #{tpu_custom_call.1} parent=11 // pred_check_branch
          %127 = sbr.rel (%p125) target = $region16
        $region15: #{tpu_custom_call.1} parent=11 // pred_region
          %s129 = ssub.s32 2048, 2048
          %130 = vsyncadd [#allocation7], %s129
          %s131 = sshll.u32 [#allocation6], 4
          %s132 = int_to_ptr.vmem [resolvable:$true] %s131
          %137 = dma.hbm_to_vmem [thread:$0]  %s1, 2048, %s132, [#allocation7], 256, 256, 16
        $region16: #{tpu_custom_call.1} parent=11 // pred_fallthru
          _
        // Predicated region
        $region17: #{tpu_custom_call.1} parent=11 // pred_check
          %p138 = pneg %p84
        $region18: #{tpu_custom_call.1} parent=11 // pred_check_branch
          %140 = sbr.rel (%p138) target = $region20
        $region19: #{tpu_custom_call.1} parent=11 // pred_region
          %s142 = ssub.s32 16, 16
          %143 = vsyncadd [#allocation7], %s142
          %s145 = sshll.u32 [#allocation8], 4
          %s146 = int_to_ptr.vmem [resolvable:$true] %s145
          %148 = dma.hbm_to_vmem [thread:$0]  %s2, 16, %s146, [#allocation7]
        $region20: #{tpu_custom_call.1} parent=11 // pred_fallthru
          _
      $region12: #{tpu_custom_call.1} parent=5 // pred_fallthru
        _
      %p149 = scmp.lt.s32.totalorder %s16, 2
      // Predicated region
      $region21: #{tpu_custom_call.1} parent=5 // pred_check
        %p150 = pneg %p149
      $region22: #{tpu_custom_call.1} parent=5 // pred_check_branch
        %152 = sbr.rel (%p150) target = $region24
      $region23: #{tpu_custom_call.1} parent=5 // pred_region
        // Predicated region
        $region25: #{tpu_custom_call.1} parent=23 // pred_check
          %p153 = pneg %p36
        $region26: #{tpu_custom_call.1} parent=23 // pred_check_branch
          %155 = sbr.rel (%p153) target = $region28
        $region27: #{tpu_custom_call.1} parent=23 // pred_region
          %s156 = sand.u32 %s26, 1
          %s157 = scalar_lea.sflag [#allocation4], %s156
          %s158 = sand.u32 %s26, 1
          %s159 = smul.addr %s158, 32
          %s160 = scalar_lea.vmem [#allocation3], %s159
          %s161 = smul.u32 8, %s16
          %s163 = ssub.s32 512, 512
          %164 = vsyncadd %s157, %s163
          %s165 = smul.addr %s161, 2
          %s166 = smul.addr %s165, 32
          %s167 = scalar_lea.hbm %s0, %s166
          %s168 = sshll.u32 %s160, 4
          %s169 = int_to_ptr.vmem [resolvable:$true] %s168
          %174 = dma.hbm_to_vmem [thread:$0]  %s167, 512, %s169, %s157, 64, 64, 4
        $region28: #{tpu_custom_call.1} parent=23 // pred_fallthru
          _
      $region24: #{tpu_custom_call.1} parent=5 // pred_fallthru
        _
      %p175 = scmp.le.s32.totalorder 1, %s16
      %p176 = scmp.lt.s32.totalorder %s16, 3
      %p177 = pnand %p175, %p176
      %p178 = pneg %p177
      // Predicated region
      $region29: #{tpu_custom_call.1} parent=5 // pred_check
        _
      $region30: #{tpu_custom_call.1} parent=5 // pred_check_branch
        %180 = sbr.rel (%p177) target = $region32
      $region31: #{tpu_custom_call.1} parent=5 // pred_region
        %s181 = ssub.s32 %s16, 1
        %s182 = sand.u32 %s29, 1
        %s183 = scalar_lea.sflag [#allocation4], %s182
        %s184 = sand.u32 %s29, 1
        %s185 = smul.addr %s184, 32
        %s186 = scalar_lea.vmem [#allocation3], %s185
        // Predicated region
        $region33: #{tpu_custom_call.1} parent=31 // pred_check
          %p187 = pneg %p42
        $region34: #{tpu_custom_call.1} parent=31 // pred_check_branch
          %189 = sbr.rel (%p187) target = $region36
        $region35: #{tpu_custom_call.1} parent=31 // pred_region
          %190 = dma.done %s183, 512
        $region36: #{tpu_custom_call.1} parent=31 // pred_fallthru
          _
        // Predicated region
        $region37: #{tpu_custom_call.1} parent=31 // pred_check
          %p191 = pneg %p63
        $region38: #{tpu_custom_call.1} parent=31 // pred_check_branch
          %193 = sbr.rel (%p191) target = $region40
        $region39: #{tpu_custom_call.1} parent=31 // pred_region
          %194 = dma.done [#allocation7], 2048
        $region40: #{tpu_custom_call.1} parent=31 // pred_fallthru
          _
        // Predicated region
        $region41: #{tpu_custom_call.1} parent=31 // pred_check
          %p195 = pneg %p84
        $region42: #{tpu_custom_call.1} parent=31 // pred_check_branch
          %197 = sbr.rel (%p195) target = $region44
        $region43: #{tpu_custom_call.1} parent=31 // pred_region
          %198 = dma.done [#allocation7], 16
        $region44: #{tpu_custom_call.1} parent=31 // pred_fallthru
          _
        %s199 = sand.u32 %s29, 1
        %s200 = scalar_lea.sflag [#allocation4], %s199
        %s201 = sand.u32 %s29, 1
        %s202 = smul.addr %s201, 32
        %s203 = scalar_lea.vmem [#allocation3], %s202
        %p204 = pneg %p42
        %p205 = pneg %p39
        %p206 = pneg %p63
        %p207 = pneg %p60
        %p208 = pneg %p84
        %p209 = pneg %p81
        %p210 = pneg %p110
        %p211 = pneg %p107
        %s212 = sand.u32 %s97, 1
        %s213 = scalar_lea.sflag [#allocation5], %s212
        %s214 = sand.u32 %s97, 1
        %s215 = smul.addr %s214, 16
        %s216 = scalar_lea.vmem [#allocation9], %s215
        %s217 = smul.u32 8, %s21
        %s218 = smul.u32 8, %s21
        %p219 = scmp.eq.s32.totalorder %s21, 0
        // Predicated region
        $region45: #{tpu_custom_call.1} parent=31 // pred_check
          %p220 = pneg %p219
        $region46: #{tpu_custom_call.1} parent=31 // pred_check_branch
          %222 = sbr.rel (%p220) target = $region48
        $region47: #{tpu_custom_call.1} parent=31 // pred_region
          %vm223 = vcmask 517120
          %224 = vst.msk [vmem:[#allocation2] sm:$0x3] %vm223, 0.0
        $region48: #{tpu_custom_call.1} parent=31 // pred_fallthru
          _
        %v225 = vld [vmem:[#allocation6] sm:$0xff]
        %v226 = vld [vmem:[#allocation6 + $0x8] sm:$0xff]
        %v227 = vld [vmem:[#allocation6 + $0x10] sm:$0xff]
        %v228 = vld [vmem:[#allocation6 + $0x18] sm:$0xff]
        %v229 = vld [vmem:[#allocation6 + $0x20] sm:$0xff]
        %v230 = vld [vmem:[#allocation6 + $0x28] sm:$0xff]
        %v231 = vld [vmem:[#allocation6 + $0x30] sm:$0xff]
        %v232 = vld [vmem:[#allocation6 + $0x38] sm:$0xff]
        %v233 = vld [vmem:[#allocation6 + $0x40] sm:$0xff]
        %v234 = vld [vmem:[#allocation6 + $0x48] sm:$0xff]
        %v235 = vld [vmem:[#allocation6 + $0x50] sm:$0xff]
        %v236 = vld [vmem:[#allocation6 + $0x58] sm:$0xff]
        %v237 = vld [vmem:[#allocation6 + $0x60] sm:$0xff]
        %v238 = vld [vmem:[#allocation6 + $0x68] sm:$0xff]
        %v239 = vld [vmem:[#allocation6 + $0x70] sm:$0xff]
        %v240 = vld [vmem:[#allocation6 + $0x78] sm:$0xff]
        %v241 = vld [vmem:[#allocation8] sm:$0x1]
        %v242 = vld [vmem:[#allocation2] sm:$0x3]
        %v243 = vld [vmem:[%s186] sm:$0xf]
        %vm244 = vcmask 523264
        %v246 = vsel %vm244, %v242, 0
        %248 = vmatprep.subr.mxu0 %v226
        %249 = vmatpush1.msra.mxu0 %v225
        %250 = vmatprep.subr.mxu0 %v228
        %251 = vmatpush1.msra.mxu0 %v227
        %252 = vmatprep.subr.mxu0 %v230
        %253 = vmatpush1.msra.mxu0 %v229
        %254 = vmatprep.subr.mxu0 %v232
        %255 = vmatpush1.msra.mxu0 %v231
        %256 = vmatprep.subr.mxu0 %v234
        %257 = vmatpush1.msra.mxu0 %v233
        %258 = vmatprep.subr.mxu0 %v236
        %259 = vmatpush1.msra.mxu0 %v235
        %260 = vmatprep.subr.mxu0 %v238
        %261 = vmatpush1.msra.mxu0 %v237
        %262 = vmatprep.subr.mxu0 %v240
        %263 = vmatpush1.msra.mxu0 %v239
        %264 = vmatprep.subr.mxu0 0.0
        %265 = vmatpush1.msra.mxu0 0.0
        %266 = vmatprep.subr.mxu0 0.0
        %267 = vmatpush1.msra.mxu0 0.0
        %268 = vmatprep.subr.mxu0 0.0
        %269 = vmatpush1.msra.mxu0 0.0
        %270 = vmatprep.subr.mxu0 0.0
        %271 = vmatpush1.msra.mxu0 0.0
        %272 = vmatprep.subr.mxu0 0.0
        %273 = vmatpush1.msra.mxu0 0.0
        %274 = vmatprep.subr.mxu0 0.0
        %275 = vmatpush1.msra.mxu0 0.0
        %276 = vmatprep.subr.mxu0 0.0
        %277 = vmatpush1.msra.mxu0 0.0
        %278 = vmatprep.subr.mxu0 0.0
        %279 = vmatpush1.msra.mxu0 0.0
        %280 = vmatprep.subr.mxu0 0.0
        %281 = vmatpush1.msra.mxu0 0.0
        %282 = vmatprep.subr.mxu0 0.0
        %283 = vmatpush1.msra.mxu0 0.0
        %284 = vmatprep.subr.mxu0 0.0
        %285 = vmatpush1.msra.mxu0 0.0
        %286 = vmatprep.subr.mxu0 0.0
        %287 = vmatpush1.msra.mxu0 0.0
        %288 = vmatprep.subr.mxu0 0.0
        %289 = vmatpush1.msra.mxu0 0.0
        %290 = vmatprep.subr.mxu0 0.0
        %291 = vmatpush1.msra.mxu0 0.0
        %292 = vmatprep.subr.mxu0 0.0
        %293 = vmatpush1.msra.mxu0 0.0
        %294 = vmatprep.subr.mxu0 0.0
        %295 = vmatpush1.msra.mxu0 0.0
        %296 = vmatprep.subr.mxu0 0.0
        %297 = vmatpush1.msra.mxu0 0.0
        %298 = vmatprep.subr.mxu0 0.0
        %299 = vmatpush1.msra.mxu0 0.0
        %300 = vmatprep.subr.mxu0 0.0
        %301 = vmatpush1.msra.mxu0 0.0
        %302 = vmatprep.subr.mxu0 0.0
        %303 = vmatpush1.msra.mxu0 0.0
        %304 = vmatprep.subr.mxu0 0.0
        %305 = vmatpush1.msra.mxu0 0.0
        %306 = vmatprep.subr.mxu0 0.0
        %307 = vmatpush1.msra.mxu0 0.0
        %308 = vmatprep.subr.mxu0 0.0
        %309 = vmatpush1.msra.mxu0 0.0
        %310 = vmatprep.subr.mxu0 0.0
        %311 = vmatpush1.msra.mxu0 0.0
        %312 = vmatprep.mubr.f32.mxu0 0.0
        %313 = vmatmul.mubr.f32.gmra.mrb[0].mxu0 %v246
        %v314 = vpop.f32.mrb[0].mxu0
        %v315 = vadd.f32 0.0, %v314
        %v316 = vpop.f32.mrb[0].mxu0
        %v317 = vadd.f32 0.0, %v316
        %318 = vdwg.mxu0
        %v319 = vadd.f32 %v243, %v315
        %v320 = vxor.u32 %v319, 2147483648
        %v321 = vmul.f32 %v320, 1.442695
        %v322 = vpow.pop %v321
        %v323 = vadd.f32 %v322, 1.0
        %v324 = vrcp.pop %v323
        %v325 = vmul.f32 1.0, %v324
        %v327 = vlaneseq
        %v328 = vshrl.u32 %v327, 7
        %v329 = vsub.s32 0, %v328
        %v330 = vrot.slane %v241, %v329
        %v332 = vadd.f32 %v317, %v330
        %v333 = vmul.f32 %v325, %v332
        %v335 = vrot.slane %v243, 2
        %v337 = vadd.f32 %v335, %v333
        %v338 = vtanh.pop %v337
        %v339 = vsub.f32 1.0, %v325
        %341 = vrot.lane.b32.xlu0 %v338, 64
        %v342 = vpop.permute.xlu0 %341
        %v344 = vmul.f32 %v339, %v342
        %v346 = vunpack.c.l.s4 1983009808
        %v347 = vunpack.c.0.s8 %v346
        %v348 = vlaneseq
        %v349 = vshrl.u32 %v348, 7
        %v350 = vsub.s32 %v347, %v349
        %v351 = vrot.slane %v242, %v350
        %352 = vrot.lane.b32.xlu0 %v351, 64
        %v353 = vpop.permute.xlu0 %352
        %v355 = vmul.f32 %v325, %v353
        %v356 = vadd.f32 %v344, %v355
        %v359 = vunpack.c.l.s4 1983009808
        %v360 = vunpack.c.0.s8 %v359
        %v361 = vlaneseq
        %v362 = vshrl.u32 %v361, 7
        %v363 = vsub.s32 %v360, %v362
        %v364 = vrot.slane %v356, %v363
        %365 = vrot.lane.b32.xlu0 %v364, 64
        %v366 = vpop.permute.xlu0 %365
        %vm368 = vcmask 517120
        %369 = vst.msk [vmem:[%s216] sm:$0x3] %vm368, %v366
        %s370 = scalar_lea.vmem %s186, 4 [#allocation3]
        %v371 = vld [vmem:[%s370] sm:$0xf]
        %v372 = vsel %vm244, %v366, 0
        %374 = vmatprep.subr.mxu0 %v226
        %375 = vmatpush1.msra.mxu0 %v225
        %376 = vmatprep.subr.mxu0 %v228
        %377 = vmatpush1.msra.mxu0 %v227
        %378 = vmatprep.subr.mxu0 %v230
        %379 = vmatpush1.msra.mxu0 %v229
        %380 = vmatprep.subr.mxu0 %v232
        %381 = vmatpush1.msra.mxu0 %v231
        %382 = vmatprep.subr.mxu0 %v234
        %383 = vmatpush1.msra.mxu0 %v233
        %384 = vmatprep.subr.mxu0 %v236
        %385 = vmatpush1.msra.mxu0 %v235
        %386 = vmatprep.subr.mxu0 %v238
        %387 = vmatpush1.msra.mxu0 %v237
        %388 = vmatprep.subr.mxu0 %v240
        %389 = vmatpush1.msra.mxu0 %v239
        %390 = vmatprep.subr.mxu0 0.0
        %391 = vmatpush1.msra.mxu0 0.0
        %392 = vmatprep.subr.mxu0 0.0
        %393 = vmatpush1.msra.mxu0 0.0
        %394 = vmatprep.subr.mxu0 0.0
        %395 = vmatpush1.msra.mxu0 0.0
        %396 = vmatprep.subr.mxu0 0.0
        %397 = vmatpush1.msra.mxu0 0.0
        %398 = vmatprep.subr.mxu0 0.0
        %399 = vmatpush1.msra.mxu0 0.0
        %400 = vmatprep.subr.mxu0 0.0
        %401 = vmatpush1.msra.mxu0 0.0
        %402 = vmatprep.subr.mxu0 0.0
        %403 = vmatpush1.msra.mxu0 0.0
        %404 = vmatprep.subr.mxu0 0.0
        %405 = vmatpush1.msra.mxu0 0.0
        %406 = vmatprep.subr.mxu0 0.0
        %407 = vmatpush1.msra.mxu0 0.0
        %408 = vmatprep.subr.mxu0 0.0
        %409 = vmatpush1.msra.mxu0 0.0
        %410 = vmatprep.subr.mxu0 0.0
        %411 = vmatpush1.msra.mxu0 0.0
        %412 = vmatprep.subr.mxu0 0.0
        %413 = vmatpush1.msra.mxu0 0.0
        %414 = vmatprep.subr.mxu0 0.0
        %415 = vmatpush1.msra.mxu0 0.0
        %416 = vmatprep.subr.mxu0 0.0
        %417 = vmatpush1.msra.mxu0 0.0
        %418 = vmatprep.subr.mxu0 0.0
        %419 = vmatpush1.msra.mxu0 0.0
        %420 = vmatprep.subr.mxu0 0.0
        %421 = vmatpush1.msra.mxu0 0.0
        %422 = vmatprep.subr.mxu0 0.0
        %423 = vmatpush1.msra.mxu0 0.0
        %424 = vmatprep.subr.mxu0 0.0
        %425 = vmatpush1.msra.mxu0 0.0
        %426 = vmatprep.subr.mxu0 0.0
        %427 = vmatpush1.msra.mxu0 0.0
        %428 = vmatprep.subr.mxu0 0.0
        %429 = vmatpush1.msra.mxu0 0.0
        %430 = vmatprep.subr.mxu0 0.0
        %431 = vmatpush1.msra.mxu0 0.0
        %432 = vmatprep.subr.mxu0 0.0
        %433 = vmatpush1.msra.mxu0 0.0
        %434 = vmatprep.subr.mxu0 0.0
        %435 = vmatpush1.msra.mxu0 0.0
        %436 = vmatprep.subr.mxu0 0.0
        %437 = vmatpush1.msra.mxu0 0.0
        %438 = vmatprep.mubr.f32.mxu0 0.0
        %439 = vmatmul.mubr.f32.gmra.mrb[0].mxu0 %v372
        %v440 = vpop.f32.mrb[0].mxu0
        %v441 = vadd.f32 0.0, %v440
        %v442 = vpop.f32.mrb[0].mxu0
        %v443 = vadd.f32 0.0, %v442
        %444 = vdwg.mxu0
        %v445 = vadd.f32 %v371, %v441
        %v446 = vxor.u32 %v445, 2147483648
        %v447 = vmul.f32 %v446, 1.442695
        %v448 = vpow.pop %v447
        %v449 = vadd.f32 %v448, 1.0
        %v450 = vrcp.pop %v449
        %v451 = vmul.f32 1.0, %v450
        %v452 = vadd.f32 %v443, %v330
        %v453 = vmul.f32 %v451, %v452
        %v455 = vrot.slane %v371, 2
        %v457 = vadd.f32 %v455, %v453
        %v458 = vtanh.pop %v457
        %v459 = vsub.f32 1.0, %v451
        %461 = vrot.lane.b32.xlu0 %v458, 64
        %v462 = vpop.permute.xlu0 %461
        %v464 = vmul.f32 %v459, %v462
        %v465 = vmul.f32 %v451, %v356
        %v466 = vadd.f32 %v464, %v465
        %v469 = vunpack.c.l.s4 1983009808
        %v470 = vunpack.c.0.s8 %v469
        %v471 = vlaneseq
        %v472 = vshrl.u32 %v471, 7
        %v473 = vsub.s32 %v470, %v472
        %v474 = vrot.slane %v466, %v473
        %475 = vrot.lane.b32.xlu0 %v474, 64
        %v476 = vpop.permute.xlu0 %475
        %s478 = scalar_lea.vmem %s216, 2 [#allocation9]
        %479 = vst.msk [vmem:[%s478] sm:$0x3] %vm368, %v476
        %s480 = scalar_lea.vmem %s186, 8 [#allocation3]
        %v481 = vld [vmem:[%s480] sm:$0xf]
        %v482 = vsel %vm244, %v476, 0
        %484 = vmatprep.subr.mxu0 %v226
        %485 = vmatpush1.msra.mxu0 %v225
        %486 = vmatprep.subr.mxu0 %v228
        %487 = vmatpush1.msra.mxu0 %v227
        %488 = vmatprep.subr.mxu0 %v230
        %489 = vmatpush1.msra.mxu0 %v229
        %490 = vmatprep.subr.mxu0 %v232
        %491 = vmatpush1.msra.mxu0 %v231
        %492 = vmatprep.subr.mxu0 %v234
        %493 = vmatpush1.msra.mxu0 %v233
        %494 = vmatprep.subr.mxu0 %v236
        %495 = vmatpush1.msra.mxu0 %v235
        %496 = vmatprep.subr.mxu0 %v238
        %497 = vmatpush1.msra.mxu0 %v237
        %498 = vmatprep.subr.mxu0 %v240
        %499 = vmatpush1.msra.mxu0 %v239
        %500 = vmatprep.subr.mxu0 0.0
        %501 = vmatpush1.msra.mxu0 0.0
        %502 = vmatprep.subr.mxu0 0.0
        %503 = vmatpush1.msra.mxu0 0.0
        %504 = vmatprep.subr.mxu0 0.0
        %505 = vmatpush1.msra.mxu0 0.0
        %506 = vmatprep.subr.mxu0 0.0
        %507 = vmatpush1.msra.mxu0 0.0
        %508 = vmatprep.subr.mxu0 0.0
        %509 = vmatpush1.msra.mxu0 0.0
        %510 = vmatprep.subr.mxu0 0.0
        %511 = vmatpush1.msra.mxu0 0.0
        %512 = vmatprep.subr.mxu0 0.0
        %513 = vmatpush1.msra.mxu0 0.0
        %514 = vmatprep.subr.mxu0 0.0
        %515 = vmatpush1.msra.mxu0 0.0
        %516 = vmatprep.subr.mxu0 0.0
        %517 = vmatpush1.msra.mxu0 0.0
        %518 = vmatprep.subr.mxu0 0.0
        %519 = vmatpush1.msra.mxu0 0.0
        %520 = vmatprep.subr.mxu0 0.0
        %521 = vmatpush1.msra.mxu0 0.0
        %522 = vmatprep.subr.mxu0 0.0
        %523 = vmatpush1.msra.mxu0 0.0
        %524 = vmatprep.subr.mxu0 0.0
        %525 = vmatpush1.msra.mxu0 0.0
        %526 = vmatprep.subr.mxu0 0.0
        %527 = vmatpush1.msra.mxu0 0.0
        %528 = vmatprep.subr.mxu0 0.0
        %529 = vmatpush1.msra.mxu0 0.0
        %530 = vmatprep.subr.mxu0 0.0
        %531 = vmatpush1.msra.mxu0 0.0
        %532 = vmatprep.subr.mxu0 0.0
        %533 = vmatpush1.msra.mxu0 0.0
        %534 = vmatprep.subr.mxu0 0.0
        %535 = vmatpush1.msra.mxu0 0.0
        %536 = vmatprep.subr.mxu0 0.0
        %537 = vmatpush1.msra.mxu0 0.0
        %538 = vmatprep.subr.mxu0 0.0
        %539 = vmatpush1.msra.mxu0 0.0
        %540 = vmatprep.subr.mxu0 0.0
        %541 = vmatpush1.msra.mxu0 0.0
        %542 = vmatprep.subr.mxu0 0.0
        %543 = vmatpush1.msra.mxu0 0.0
        %544 = vmatprep.subr.mxu0 0.0
        %545 = vmatpush1.msra.mxu0 0.0
        %546 = vmatprep.subr.mxu0 0.0
        %547 = vmatpush1.msra.mxu0 0.0
        %548 = vmatprep.mubr.f32.mxu0 0.0
        %549 = vmatmul.mubr.f32.gmra.mrb[0].mxu0 %v482
        %v550 = vpop.f32.mrb[0].mxu0
        %v551 = vadd.f32 0.0, %v550
        %v552 = vpop.f32.mrb[0].mxu0
        %v553 = vadd.f32 0.0, %v552
        %554 = vdwg.mxu0
        %v555 = vadd.f32 %v481, %v551
        %v556 = vxor.u32 %v555, 2147483648
        %v557 = vmul.f32 %v556, 1.442695
        %v558 = vpow.pop %v557
        %v559 = vadd.f32 %v558, 1.0
        %v560 = vrcp.pop %v559
        %v561 = vmul.f32 1.0, %v560
        %v562 = vadd.f32 %v553, %v330
        %v563 = vmul.f32 %v561, %v562
        %v565 = vrot.slane %v481, 2
        %v567 = vadd.f32 %v565, %v563
        %v568 = vtanh.pop %v567
        %v569 = vsub.f32 1.0, %v561
        %571 = vrot.lane.b32.xlu0 %v568, 64
        %v572 = vpop.permute.xlu0 %571
        %v574 = vmul.f32 %v569, %v572
        %v575 = vmul.f32 %v561, %v466
        %v576 = vadd.f32 %v574, %v575
        %v579 = vunpack.c.l.s4 1983009808
        %v580 = vunpack.c.0.s8 %v579
        %v581 = vlaneseq
        %v582 = vshrl.u32 %v581, 7
        %v583 = vsub.s32 %v580, %v582
        %v584 = vrot.slane %v576, %v583
        %585 = vrot.lane.b32.xlu0 %v584, 64
        %v586 = vpop.permute.xlu0 %585
        %s588 = scalar_lea.vmem %s216, 4 [#allocation9]
        %589 = vst.msk [vmem:[%s588] sm:$0x3] %vm368, %v586
        %s590 = scalar_lea.vmem %s186, 12 [#allocation3]
        %v591 = vld [vmem:[%s590] sm:$0xf]
        %v592 = vsel %vm244, %v586, 0
        %594 = vmatprep.subr.mxu0 %v226
        %595 = vmatpush1.msra.mxu0 %v225
        %596 = vmatprep.subr.mxu0 %v228
        %597 = vmatpush1.msra.mxu0 %v227
        %598 = vmatprep.subr.mxu0 %v230
        %599 = vmatpush1.msra.mxu0 %v229
        %600 = vmatprep.subr.mxu0 %v232
        %601 = vmatpush1.msra.mxu0 %v231
        %602 = vmatprep.subr.mxu0 %v234
        %603 = vmatpush1.msra.mxu0 %v233
        %604 = vmatprep.subr.mxu0 %v236
        %605 = vmatpush1.msra.mxu0 %v235
        %606 = vmatprep.subr.mxu0 %v238
        %607 = vmatpush1.msra.mxu0 %v237
        %608 = vmatprep.subr.mxu0 %v240
        %609 = vmatpush1.msra.mxu0 %v239
        %610 = vmatprep.subr.mxu0 0.0
        %611 = vmatpush1.msra.mxu0 0.0
        %612 = vmatprep.subr.mxu0 0.0
        %613 = vmatpush1.msra.mxu0 0.0
        %614 = vmatprep.subr.mxu0 0.0
        %615 = vmatpush1.msra.mxu0 0.0
        %616 = vmatprep.subr.mxu0 0.0
        %617 = vmatpush1.msra.mxu0 0.0
        %618 = vmatprep.subr.mxu0 0.0
        %619 = vmatpush1.msra.mxu0 0.0
        %620 = vmatprep.subr.mxu0 0.0
        %621 = vmatpush1.msra.mxu0 0.0
        %622 = vmatprep.subr.mxu0 0.0
        %623 = vmatpush1.msra.mxu0 0.0
        %624 = vmatprep.subr.mxu0 0.0
        %625 = vmatpush1.msra.mxu0 0.0
        %626 = vmatprep.subr.mxu0 0.0
        %627 = vmatpush1.msra.mxu0 0.0
        %628 = vmatprep.subr.mxu0 0.0
        %629 = vmatpush1.msra.mxu0 0.0
        %630 = vmatprep.subr.mxu0 0.0
        %631 = vmatpush1.msra.mxu0 0.0
        %632 = vmatprep.subr.mxu0 0.0
        %633 = vmatpush1.msra.mxu0 0.0
        %634 = vmatprep.subr.mxu0 0.0
        %635 = vmatpush1.msra.mxu0 0.0
        %636 = vmatprep.subr.mxu0 0.0
        %637 = vmatpush1.msra.mxu0 0.0
        %638 = vmatprep.subr.mxu0 0.0
        %639 = vmatpush1.msra.mxu0 0.0
        %640 = vmatprep.subr.mxu0 0.0
        %641 = vmatpush1.msra.mxu0 0.0
        %642 = vmatprep.subr.mxu0 0.0
        %643 = vmatpush1.msra.mxu0 0.0
        %644 = vmatprep.subr.mxu0 0.0
        %645 = vmatpush1.msra.mxu0 0.0
        %646 = vmatprep.subr.mxu0 0.0
        %647 = vmatpush1.msra.mxu0 0.0
        %648 = vmatprep.subr.mxu0 0.0
        %649 = vmatpush1.msra.mxu0 0.0
        %650 = vmatprep.subr.mxu0 0.0
        %651 = vmatpush1.msra.mxu0 0.0
        %652 = vmatprep.subr.mxu0 0.0
        %653 = vmatpush1.msra.mxu0 0.0
        %654 = vmatprep.subr.mxu0 0.0
        %655 = vmatpush1.msra.mxu0 0.0
        %656 = vmatprep.subr.mxu0 0.0
        %657 = vmatpush1.msra.mxu0 0.0
        %658 = vmatprep.mubr.f32.mxu0 0.0
        %659 = vmatmul.mubr.f32.gmra.mrb[0].mxu0 %v592
        %v660 = vpop.f32.mrb[0].mxu0
        %v661 = vadd.f32 0.0, %v660
        %v662 = vpop.f32.mrb[0].mxu0
        %v663 = vadd.f32 0.0, %v662
        %664 = vdwg.mxu0
        %v665 = vadd.f32 %v591, %v661
        %v666 = vxor.u32 %v665, 2147483648
        %v667 = vmul.f32 %v666, 1.442695
        %v668 = vpow.pop %v667
        %v669 = vadd.f32 %v668, 1.0
        %v670 = vrcp.pop %v669
        %v671 = vmul.f32 1.0, %v670
        %v672 = vadd.f32 %v663, %v330
        %v673 = vmul.f32 %v671, %v672
        %v675 = vrot.slane %v591, 2
        %v677 = vadd.f32 %v675, %v673
        %v678 = vtanh.pop %v677
        %v679 = vsub.f32 1.0, %v671
        %681 = vrot.lane.b32.xlu0 %v678, 64
        %v682 = vpop.permute.xlu0 %681
        %v684 = vmul.f32 %v679, %v682
        %v685 = vmul.f32 %v671, %v576
        %v686 = vadd.f32 %v684, %v685
        %v689 = vunpack.c.l.s4 1983009808
        %v690 = vunpack.c.0.s8 %v689
        %v691 = vlaneseq
        %v692 = vshrl.u32 %v691, 7
        %v693 = vsub.s32 %v690, %v692
        %v694 = vrot.slane %v686, %v693
        %695 = vrot.lane.b32.xlu0 %v694, 64
        %v696 = vpop.permute.xlu0 %695
        %s698 = scalar_lea.vmem %s216, 6 [#allocation9]
        %699 = vst.msk [vmem:[%s698] sm:$0x3] %vm368, %v696
        %s700 = scalar_lea.vmem %s186, 16 [#allocation3]
        %v701 = vld [vmem:[%s700] sm:$0xf]
        %v702 = vsel %vm244, %v696, 0
        %704 = vmatprep.subr.mxu0 %v226
        %705 = vmatpush1.msra.mxu0 %v225
        %706 = vmatprep.subr.mxu0 %v228
        %707 = vmatpush1.msra.mxu0 %v227
        %708 = vmatprep.subr.mxu0 %v230
        %709 = vmatpush1.msra.mxu0 %v229
        %710 = vmatprep.subr.mxu0 %v232
        %711 = vmatpush1.msra.mxu0 %v231
        %712 = vmatprep.subr.mxu0 %v234
        %713 = vmatpush1.msra.mxu0 %v233
        %714 = vmatprep.subr.mxu0 %v236
        %715 = vmatpush1.msra.mxu0 %v235
        %716 = vmatprep.subr.mxu0 %v238
        %717 = vmatpush1.msra.mxu0 %v237
        %718 = vmatprep.subr.mxu0 %v240
        %719 = vmatpush1.msra.mxu0 %v239
        %720 = vmatprep.subr.mxu0 0.0
        %721 = vmatpush1.msra.mxu0 0.0
        %722 = vmatprep.subr.mxu0 0.0
        %723 = vmatpush1.msra.mxu0 0.0
        %724 = vmatprep.subr.mxu0 0.0
        %725 = vmatpush1.msra.mxu0 0.0
        %726 = vmatprep.subr.mxu0 0.0
        %727 = vmatpush1.msra.mxu0 0.0
        %728 = vmatprep.subr.mxu0 0.0
        %729 = vmatpush1.msra.mxu0 0.0
        %730 = vmatprep.subr.mxu0 0.0
        %731 = vmatpush1.msra.mxu0 0.0
        %732 = vmatprep.subr.mxu0 0.0
        %733 = vmatpush1.msra.mxu0 0.0
        %734 = vmatprep.subr.mxu0 0.0
        %735 = vmatpush1.msra.mxu0 0.0
        %736 = vmatprep.subr.mxu0 0.0
        %737 = vmatpush1.msra.mxu0 0.0
        %738 = vmatprep.subr.mxu0 0.0
        %739 = vmatpush1.msra.mxu0 0.0
        %740 = vmatprep.subr.mxu0 0.0
        %741 = vmatpush1.msra.mxu0 0.0
        %742 = vmatprep.subr.mxu0 0.0
        %743 = vmatpush1.msra.mxu0 0.0
        %744 = vmatprep.subr.mxu0 0.0
        %745 = vmatpush1.msra.mxu0 0.0
        %746 = vmatprep.subr.mxu0 0.0
        %747 = vmatpush1.msra.mxu0 0.0
        %748 = vmatprep.subr.mxu0 0.0
        %749 = vmatpush1.msra.mxu0 0.0
        %750 = vmatprep.subr.mxu0 0.0
        %751 = vmatpush1.msra.mxu0 0.0
        %752 = vmatprep.subr.mxu0 0.0
        %753 = vmatpush1.msra.mxu0 0.0
        %754 = vmatprep.subr.mxu0 0.0
        %755 = vmatpush1.msra.mxu0 0.0
        %756 = vmatprep.subr.mxu0 0.0
        %757 = vmatpush1.msra.mxu0 0.0
        %758 = vmatprep.subr.mxu0 0.0
        %759 = vmatpush1.msra.mxu0 0.0
        %760 = vmatprep.subr.mxu0 0.0
        %761 = vmatpush1.msra.mxu0 0.0
        %762 = vmatprep.subr.mxu0 0.0
        %763 = vmatpush1.msra.mxu0 0.0
        %764 = vmatprep.subr.mxu0 0.0
        %765 = vmatpush1.msra.mxu0 0.0
        %766 = vmatprep.subr.mxu0 0.0
        %767 = vmatpush1.msra.mxu0 0.0
        %768 = vmatprep.mubr.f32.mxu0 0.0
        %769 = vmatmul.mubr.f32.gmra.mrb[0].mxu0 %v702
        %v770 = vpop.f32.mrb[0].mxu0
        %v771 = vadd.f32 0.0, %v770
        %v772 = vpop.f32.mrb[0].mxu0
        %v773 = vadd.f32 0.0, %v772
        %774 = vdwg.mxu0
        %v775 = vadd.f32 %v701, %v771
        %v776 = vxor.u32 %v775, 2147483648
        %v777 = vmul.f32 %v776, 1.442695
        %v778 = vpow.pop %v777
        %v779 = vadd.f32 %v778, 1.0
        %v780 = vrcp.pop %v779
        %v781 = vmul.f32 1.0, %v780
        %v782 = vadd.f32 %v773, %v330
        %v783 = vmul.f32 %v781, %v782
        %v785 = vrot.slane %v701, 2
        %v787 = vadd.f32 %v785, %v783
        %v788 = vtanh.pop %v787
        %v789 = vsub.f32 1.0, %v781
        %791 = vrot.lane.b32.xlu0 %v788, 64
        %v792 = vpop.permute.xlu0 %791
        %v794 = vmul.f32 %v789, %v792
        %v795 = vmul.f32 %v781, %v686
        %v796 = vadd.f32 %v794, %v795
        %v799 = vunpack.c.l.s4 1983009808
        %v800 = vunpack.c.0.s8 %v799
        %v801 = vlaneseq
        %v802 = vshrl.u32 %v801, 7
        %v803 = vsub.s32 %v800, %v802
        %v804 = vrot.slane %v796, %v803
        %805 = vrot.lane.b32.xlu0 %v804, 64
        %v806 = vpop.permute.xlu0 %805
        %s808 = scalar_lea.vmem %s216, 8 [#allocation9]
        %809 = vst.msk [vmem:[%s808] sm:$0x3] %vm368, %v806
        %s810 = scalar_lea.vmem %s186, 20 [#allocation3]
        %v811 = vld [vmem:[%s810] sm:$0xf]
        %v812 = vsel %vm244, %v806, 0
        %814 = vmatprep.subr.mxu0 %v226
        %815 = vmatpush1.msra.mxu0 %v225
        %816 = vmatprep.subr.mxu0 %v228
        %817 = vmatpush1.msra.mxu0 %v227
        %818 = vmatprep.subr.mxu0 %v230
        %819 = vmatpush1.msra.mxu0 %v229
        %820 = vmatprep.subr.mxu0 %v232
        %821 = vmatpush1.msra.mxu0 %v231
        %822 = vmatprep.subr.mxu0 %v234
        %823 = vmatpush1.msra.mxu0 %v233
        %824 = vmatprep.subr.mxu0 %v236
        %825 = vmatpush1.msra.mxu0 %v235
        %826 = vmatprep.subr.mxu0 %v238
        %827 = vmatpush1.msra.mxu0 %v237
        %828 = vmatprep.subr.mxu0 %v240
        %829 = vmatpush1.msra.mxu0 %v239
        %830 = vmatprep.subr.mxu0 0.0
        %831 = vmatpush1.msra.mxu0 0.0
        %832 = vmatprep.subr.mxu0 0.0
        %833 = vmatpush1.msra.mxu0 0.0
        %834 = vmatprep.subr.mxu0 0.0
        %835 = vmatpush1.msra.mxu0 0.0
        %836 = vmatprep.subr.mxu0 0.0
        %837 = vmatpush1.msra.mxu0 0.0
        %838 = vmatprep.subr.mxu0 0.0
        %839 = vmatpush1.msra.mxu0 0.0
        %840 = vmatprep.subr.mxu0 0.0
        %841 = vmatpush1.msra.mxu0 0.0
        %842 = vmatprep.subr.mxu0 0.0
        %843 = vmatpush1.msra.mxu0 0.0
        %844 = vmatprep.subr.mxu0 0.0
        %845 = vmatpush1.msra.mxu0 0.0
        %846 = vmatprep.subr.mxu0 0.0
        %847 = vmatpush1.msra.mxu0 0.0
        %848 = vmatprep.subr.mxu0 0.0
        %849 = vmatpush1.msra.mxu0 0.0
        %850 = vmatprep.subr.mxu0 0.0
        %851 = vmatpush1.msra.mxu0 0.0
        %852 = vmatprep.subr.mxu0 0.0
        %853 = vmatpush1.msra.mxu0 0.0
        %854 = vmatprep.subr.mxu0 0.0
        %855 = vmatpush1.msra.mxu0 0.0
        %856 = vmatprep.subr.mxu0 0.0
        %857 = vmatpush1.msra.mxu0 0.0
        %858 = vmatprep.subr.mxu0 0.0
        %859 = vmatpush1.msra.mxu0 0.0
        %860 = vmatprep.subr.mxu0 0.0
        %861 = vmatpush1.msra.mxu0 0.0
        %862 = vmatprep.subr.mxu0 0.0
        %863 = vmatpush1.msra.mxu0 0.0
        %864 = vmatprep.subr.mxu0 0.0
        %865 = vmatpush1.msra.mxu0 0.0
        %866 = vmatprep.subr.mxu0 0.0
        %867 = vmatpush1.msra.mxu0 0.0
        %868 = vmatprep.subr.mxu0 0.0
        %869 = vmatpush1.msra.mxu0 0.0
        %870 = vmatprep.subr.mxu0 0.0
        %871 = vmatpush1.msra.mxu0 0.0
        %872 = vmatprep.subr.mxu0 0.0
        %873 = vmatpush1.msra.mxu0 0.0
        %874 = vmatprep.subr.mxu0 0.0
        %875 = vmatpush1.msra.mxu0 0.0
        %876 = vmatprep.subr.mxu0 0.0
        %877 = vmatpush1.msra.mxu0 0.0
        %878 = vmatprep.mubr.f32.mxu0 0.0
        %879 = vmatmul.mubr.f32.gmra.mrb[0].mxu0 %v812
        %v880 = vpop.f32.mrb[0].mxu0
        %v881 = vadd.f32 0.0, %v880
        %v882 = vpop.f32.mrb[0].mxu0
        %v883 = vadd.f32 0.0, %v882
        %884 = vdwg.mxu0
        %v885 = vadd.f32 %v811, %v881
        %v886 = vxor.u32 %v885, 2147483648
        %v887 = vmul.f32 %v886, 1.442695
        %v888 = vpow.pop %v887
        %v889 = vadd.f32 %v888, 1.0
        %v890 = vrcp.pop %v889
        %v891 = vmul.f32 1.0, %v890
        %v892 = vadd.f32 %v883, %v330
        %v893 = vmul.f32 %v891, %v892
        %v895 = vrot.slane %v811, 2
        %v897 = vadd.f32 %v895, %v893
        %v898 = vtanh.pop %v897
        %v899 = vsub.f32 1.0, %v891
        %901 = vrot.lane.b32.xlu0 %v898, 64
        %v902 = vpop.permute.xlu0 %901
        %v904 = vmul.f32 %v899, %v902
        %v905 = vmul.f32 %v891, %v796
        %v906 = vadd.f32 %v904, %v905
        %v909 = vunpack.c.l.s4 1983009808
        %v910 = vunpack.c.0.s8 %v909
        %v911 = vlaneseq
        %v912 = vshrl.u32 %v911, 7
        %v913 = vsub.s32 %v910, %v912
        %v914 = vrot.slane %v906, %v913
        %915 = vrot.lane.b32.xlu0 %v914, 64
        %v916 = vpop.permute.xlu0 %915
        %s918 = scalar_lea.vmem %s216, 10 [#allocation9]
        %919 = vst.msk [vmem:[%s918] sm:$0x3] %vm368, %v916
        %s920 = scalar_lea.vmem %s186, 24 [#allocation3]
        %v921 = vld [vmem:[%s920] sm:$0xf]
        %v922 = vsel %vm244, %v916, 0
        %924 = vmatprep.subr.mxu0 %v226
        %925 = vmatpush1.msra.mxu0 %v225
        %926 = vmatprep.subr.mxu0 %v228
        %927 = vmatpush1.msra.mxu0 %v227
        %928 = vmatprep.subr.mxu0 %v230
        %929 = vmatpush1.msra.mxu0 %v229
        %930 = vmatprep.subr.mxu0 %v232
        %931 = vmatpush1.msra.mxu0 %v231
        %932 = vmatprep.subr.mxu0 %v234
        %933 = vmatpush1.msra.mxu0 %v233
        %934 = vmatprep.subr.mxu0 %v236
        %935 = vmatpush1.msra.mxu0 %v235
        %936 = vmatprep.subr.mxu0 %v238
        %937 = vmatpush1.msra.mxu0 %v237
        %938 = vmatprep.subr.mxu0 %v240
        %939 = vmatpush1.msra.mxu0 %v239
        %940 = vmatprep.subr.mxu0 0.0
        %941 = vmatpush1.msra.mxu0 0.0
        %942 = vmatprep.subr.mxu0 0.0
        %943 = vmatpush1.msra.mxu0 0.0
        %944 = vmatprep.subr.mxu0 0.0
        %945 = vmatpush1.msra.mxu0 0.0
        %946 = vmatprep.subr.mxu0 0.0
        %947 = vmatpush1.msra.mxu0 0.0
        %948 = vmatprep.subr.mxu0 0.0
        %949 = vmatpush1.msra.mxu0 0.0
        %950 = vmatprep.subr.mxu0 0.0
        %951 = vmatpush1.msra.mxu0 0.0
        %952 = vmatprep.subr.mxu0 0.0
        %953 = vmatpush1.msra.mxu0 0.0
        %954 = vmatprep.subr.mxu0 0.0
        %955 = vmatpush1.msra.mxu0 0.0
        %956 = vmatprep.subr.mxu0 0.0
        %957 = vmatpush1.msra.mxu0 0.0
        %958 = vmatprep.subr.mxu0 0.0
        %959 = vmatpush1.msra.mxu0 0.0
        %960 = vmatprep.subr.mxu0 0.0
        %961 = vmatpush1.msra.mxu0 0.0
        %962 = vmatprep.subr.mxu0 0.0
        %963 = vmatpush1.msra.mxu0 0.0
        %964 = vmatprep.subr.mxu0 0.0
        %965 = vmatpush1.msra.mxu0 0.0
        %966 = vmatprep.subr.mxu0 0.0
        %967 = vmatpush1.msra.mxu0 0.0
        %968 = vmatprep.subr.mxu0 0.0
        %969 = vmatpush1.msra.mxu0 0.0
        %970 = vmatprep.subr.mxu0 0.0
        %971 = vmatpush1.msra.mxu0 0.0
        %972 = vmatprep.subr.mxu0 0.0
        %973 = vmatpush1.msra.mxu0 0.0
        %974 = vmatprep.subr.mxu0 0.0
        %975 = vmatpush1.msra.mxu0 0.0
        %976 = vmatprep.subr.mxu0 0.0
        %977 = vmatpush1.msra.mxu0 0.0
        %978 = vmatprep.subr.mxu0 0.0
        %979 = vmatpush1.msra.mxu0 0.0
        %980 = vmatprep.subr.mxu0 0.0
        %981 = vmatpush1.msra.mxu0 0.0
        %982 = vmatprep.subr.mxu0 0.0
        %983 = vmatpush1.msra.mxu0 0.0
        %984 = vmatprep.subr.mxu0 0.0
        %985 = vmatpush1.msra.mxu0 0.0
        %986 = vmatprep.subr.mxu0 0.0
        %987 = vmatpush1.msra.mxu0 0.0
        %988 = vmatprep.mubr.f32.mxu0 0.0
        %989 = vmatmul.mubr.f32.gmra.mrb[0].mxu0 %v922
        %v990 = vpop.f32.mrb[0].mxu0
        %v991 = vadd.f32 0.0, %v990
        %v992 = vpop.f32.mrb[0].mxu0
        %v993 = vadd.f32 0.0, %v992
        %994 = vdwg.mxu0
        %v995 = vadd.f32 %v921, %v991
        %v996 = vxor.u32 %v995, 2147483648
        %v997 = vmul.f32 %v996, 1.442695
        %v998 = vpow.pop %v997
        %v999 = vadd.f32 %v998, 1.0
        %v1000 = vrcp.pop %v999
        %v1001 = vmul.f32 1.0, %v1000
        %v1002 = vadd.f32 %v993, %v330
        %v1003 = vmul.f32 %v1001, %v1002
        %v1005 = vrot.slane %v921, 2
        %v1007 = vadd.f32 %v1005, %v1003
        %v1008 = vtanh.pop %v1007
        %v1009 = vsub.f32 1.0, %v1001
        %1011 = vrot.lane.b32.xlu0 %v1008, 64
        %v1012 = vpop.permute.xlu0 %1011
        %v1014 = vmul.f32 %v1009, %v1012
        %v1015 = vmul.f32 %v1001, %v906
        %v1016 = vadd.f32 %v1014, %v1015
        %v1019 = vunpack.c.l.s4 1983009808
        %v1020 = vunpack.c.0.s8 %v1019
        %v1021 = vlaneseq
        %v1022 = vshrl.u32 %v1021, 7
        %v1023 = vsub.s32 %v1020, %v1022
        %v1024 = vrot.slane %v1016, %v1023
        %1025 = vrot.lane.b32.xlu0 %v1024, 64
        %v1026 = vpop.permute.xlu0 %1025
        %s1028 = scalar_lea.vmem %s216, 12 [#allocation9]
        %1029 = vst.msk [vmem:[%s1028] sm:$0x3] %vm368, %v1026
        %s1030 = scalar_lea.vmem %s186, 28 [#allocation3]
        %v1031 = vld [vmem:[%s1030] sm:$0xf]
        %v1032 = vsel %vm244, %v1026, 0
        %1034 = vmatprep.subr.mxu0 %v226
        %1035 = vmatpush1.msra.mxu0 %v225
        %1036 = vmatprep.subr.mxu0 %v228
        %1037 = vmatpush1.msra.mxu0 %v227
        %1038 = vmatprep.subr.mxu0 %v230
        %1039 = vmatpush1.msra.mxu0 %v229
        %1040 = vmatprep.subr.mxu0 %v232
        %1041 = vmatpush1.msra.mxu0 %v231
        %1042 = vmatprep.subr.mxu0 %v234
        %1043 = vmatpush1.msra.mxu0 %v233
        %1044 = vmatprep.subr.mxu0 %v236
        %1045 = vmatpush1.msra.mxu0 %v235
        %1046 = vmatprep.subr.mxu0 %v238
        %1047 = vmatpush1.msra.mxu0 %v237
        %1048 = vmatprep.subr.mxu0 %v240
        %1049 = vmatpush1.msra.mxu0 %v239
        %1050 = vmatprep.subr.mxu0 0.0
        %1051 = vmatpush1.msra.mxu0 0.0
        %1052 = vmatprep.subr.mxu0 0.0
        %1053 = vmatpush1.msra.mxu0 0.0
        %1054 = vmatprep.subr.mxu0 0.0
        %1055 = vmatpush1.msra.mxu0 0.0
        %1056 = vmatprep.subr.mxu0 0.0
        %1057 = vmatpush1.msra.mxu0 0.0
        %1058 = vmatprep.subr.mxu0 0.0
        %1059 = vmatpush1.msra.mxu0 0.0
        %1060 = vmatprep.subr.mxu0 0.0
        %1061 = vmatpush1.msra.mxu0 0.0
        %1062 = vmatprep.subr.mxu0 0.0
        %1063 = vmatpush1.msra.mxu0 0.0
        %1064 = vmatprep.subr.mxu0 0.0
        %1065 = vmatpush1.msra.mxu0 0.0
        %1066 = vmatprep.subr.mxu0 0.0
        %1067 = vmatpush1.msra.mxu0 0.0
        %1068 = vmatprep.subr.mxu0 0.0
        %1069 = vmatpush1.msra.mxu0 0.0
        %1070 = vmatprep.subr.mxu0 0.0
        %1071 = vmatpush1.msra.mxu0 0.0
        %1072 = vmatprep.subr.mxu0 0.0
        %1073 = vmatpush1.msra.mxu0 0.0
        %1074 = vmatprep.subr.mxu0 0.0
        %1075 = vmatpush1.msra.mxu0 0.0
        %1076 = vmatprep.subr.mxu0 0.0
        %1077 = vmatpush1.msra.mxu0 0.0
        %1078 = vmatprep.subr.mxu0 0.0
        %1079 = vmatpush1.msra.mxu0 0.0
        %1080 = vmatprep.subr.mxu0 0.0
        %1081 = vmatpush1.msra.mxu0 0.0
        %1082 = vmatprep.subr.mxu0 0.0
        %1083 = vmatpush1.msra.mxu0 0.0
        %1084 = vmatprep.subr.mxu0 0.0
        %1085 = vmatpush1.msra.mxu0 0.0
        %1086 = vmatprep.subr.mxu0 0.0
        %1087 = vmatpush1.msra.mxu0 0.0
        %1088 = vmatprep.subr.mxu0 0.0
        %1089 = vmatpush1.msra.mxu0 0.0
        %1090 = vmatprep.subr.mxu0 0.0
        %1091 = vmatpush1.msra.mxu0 0.0
        %1092 = vmatprep.subr.mxu0 0.0
        %1093 = vmatpush1.msra.mxu0 0.0
        %1094 = vmatprep.subr.mxu0 0.0
        %1095 = vmatpush1.msra.mxu0 0.0
        %1096 = vmatprep.subr.mxu0 0.0
        %1097 = vmatpush1.msra.mxu0 0.0
        %1098 = vmatprep.mubr.f32.mxu0 0.0
        %1099 = vmatmul.mubr.f32.gmra.mrb[0].mxu0 %v1032
        %v1100 = vpop.f32.mrb[0].mxu0
        %v1101 = vadd.f32 0.0, %v1100
        %v1102 = vpop.f32.mrb[0].mxu0
        %v1103 = vadd.f32 0.0, %v1102
        %1104 = vdwg.mxu0
        %v1105 = vadd.f32 %v1031, %v1101
        %v1106 = vxor.u32 %v1105, 2147483648
        %v1107 = vmul.f32 %v1106, 1.442695
        %v1108 = vpow.pop %v1107
        %v1109 = vadd.f32 %v1108, 1.0
        %v1110 = vrcp.pop %v1109
        %v1111 = vmul.f32 1.0, %v1110
        %v1112 = vadd.f32 %v1103, %v330
        %v1113 = vmul.f32 %v1111, %v1112
        %v1115 = vrot.slane %v1031, 2
        %v1117 = vadd.f32 %v1115, %v1113
        %v1118 = vtanh.pop %v1117
        %v1119 = vsub.f32 1.0, %v1111
        %1121 = vrot.lane.b32.xlu0 %v1118, 64
        %v1122 = vpop.permute.xlu0 %1121
        %v1124 = vmul.f32 %v1119, %v1122
        %v1125 = vmul.f32 %v1111, %v1016
        %v1126 = vadd.f32 %v1124, %v1125
        %v1129 = vunpack.c.l.s4 1983009808
        %v1130 = vunpack.c.0.s8 %v1129
        %v1131 = vlaneseq
        %v1132 = vshrl.u32 %v1131, 7
        %v1133 = vsub.s32 %v1130, %v1132
        %v1134 = vrot.slane %v1126, %v1133
        %1135 = vrot.lane.b32.xlu0 %v1134, 64
        %v1136 = vpop.permute.xlu0 %1135
        %s1138 = scalar_lea.vmem %s216, 14 [#allocation9]
        %1139 = vst.msk [vmem:[%s1138] sm:$0x3] %vm368, %v1136
        %1140 = vst.msk [vmem:[#allocation2] sm:$0x3] %vm368, %v1136
        %s1141 = sand.u32 %s97, 1
        %s1142 = scalar_lea.sflag [#allocation5], %s1141
        %s1143 = sand.u32 %s97, 1
        %s1144 = smul.addr %s1143, 16
        %s1145 = scalar_lea.vmem [#allocation9], %s1144
        // Predicated region
        $region49: #{tpu_custom_call.1} parent=31 // pred_check
          %p1146 = pneg %p107
        $region50: #{tpu_custom_call.1} parent=31 // pred_check_branch
          %1148 = sbr.rel (%p1146) target = $region52
        $region51: #{tpu_custom_call.1} parent=31 // pred_region
          %s1149 = smul.u32 8, %s21
          %s1151 = ssub.s32 256, 256
          %1152 = vsyncadd %s1142, %s1151
          %s1153 = smul.addr %s1149, 32
          %s1154 = scalar_lea.hbm %s3, %s1153
          %s1155 = sshll.u32 %s1145, 4
          %s1156 = int_to_ptr.vmem [resolvable:$true] %s1155
          %1161 = dma.vmem_to_hbm [thread:$0]  %s1156, 256, %s1154, %s1142, 32, 32, 2
        $region52: #{tpu_custom_call.1} parent=31 // pred_fallthru
          _
      $region32: #{tpu_custom_call.1} parent=5 // pred_fallthru
        _
      %p1162 = scmp.le.s32.totalorder 2, %s16
      // Predicated region
      $region53: #{tpu_custom_call.1} parent=5 // pred_check
        %p1163 = pneg %p1162
      $region54: #{tpu_custom_call.1} parent=5 // pred_check_branch
        %1165 = sbr.rel (%p1163) target = $region56
      $region55: #{tpu_custom_call.1} parent=5 // pred_region
        %s1166 = ssub.s32 %s16, 2
        // Predicated region
        $region57: #{tpu_custom_call.1} parent=55 // pred_check
          %p1167 = pneg %p113
        $region58: #{tpu_custom_call.1} parent=55 // pred_check_branch
          %1169 = sbr.rel (%p1167) target = $region60
        $region59: #{tpu_custom_call.1} parent=55 // pred_region
          %s1170 = sand.u32 %s98, 1
          %s1171 = scalar_lea.sflag [#allocation5], %s1170
          %s1172 = sand.u32 %s98, 1
          %s1173 = smul.addr %s1172, 16
          %s1174 = scalar_lea.vmem [#allocation9], %s1173
          %1175 = dma.done %s1171, 256
        $region60: #{tpu_custom_call.1} parent=55 // pred_fallthru
          _
      $region56: #{tpu_custom_call.1} parent=5 // pred_fallthru
        _
    $region6: #{tpu_custom_call.1} parent=1 // loop_footer
      %s20 = sadd.s32 1, %s16
    $region7: #{tpu_custom_call.1} parent=1 // loop_footer_branch
      %15 = sbr.rel target = $region3
    $region8: #{tpu_custom_call.1} parent=1 // loop_exit
      _
    %1176 = vsyncpa [#allocation4], 1
    %s1177 = scalar_lea.sflag [#allocation4], 1
    %1178 = vsyncpa %s1177, 1
    %1179 = vsyncpa [#allocation7], 1
    %1180 = vsyncpa [#allocation5], 1
    %s1181 = scalar_lea.sflag [#allocation5], 1
    %1182 = vsyncpa %s1181, 1

</llo_original>
